<compile_context>
chip_gen: v7x
topology: tpu7x:2x2x1
jax: 0.10.0
libtpu: 0.0.40
codegen_flags: <defaults>
</compile_context>

<pallas_src>
import functools

import jax
import jax.numpy as jnp
import numpy as np
from jax import lax
from jax.experimental import pallas as pl
from jax.experimental.pallas import tpu as pltpu

F32 = jnp.float32
BF16 = jnp.bfloat16

VMEM_SPEC = pl.BlockSpec(memory_space=pltpu.MemorySpace.VMEM)
SMEM_SPEC = pl.BlockSpec(memory_space=pltpu.MemorySpace.SMEM)


# --------------------------- shared in-kernel math ---------------------------


def _l2_normalize(v, eps=1e-12):
  return v * lax.rsqrt(jnp.sum(v * v, axis=-1, keepdims=True) + eps)


def _residual_vq(x, codebooks, col_ids, sq_err):
  """Cosine-sim residual VQ over one layer's (pre-normalized) codebooks.

  x:          (rows, D) f32 node features.
  codebooks:  list of (K, D) f32 L2-normalized codebooks (one per quantizer).
  col_ids:    (rows, K) int32 iota along the codebook axis (hoisted by caller).
  sq_err:     (rows, D) f32 running elementwise squared-error accumulator.

  Returns (idx_cols, sq_err): idx_cols is a list of (rows, 1) int32 code ids.
  """
  # TODO(synk): verify against graphgps/network/vq.py ResidualVectorQuant
  #   whether the next residual is formed from the raw or the normalized
  #   residual, and whether the commitment loss is zeroed in eval mode.
  idx_cols = []
  residual = x
  for cb_n in codebooks:
    k = cb_n.shape[0]
    # L2-normalize the residual before BOTH the distance and the commitment
    # term (cosine-sim VQ); the cascade continues in normalized space.
    r_n = _l2_normalize(residual)
    sim = lax.dot_general(r_n, cb_n, (((1,), (1,)), ((), ())),
                          preferred_element_type=F32)            # (rows, K)
    max_sim = jnp.max(sim, axis=-1, keepdims=True)
    # first index attaining the max (torch argmax tie-break)
    idx = jnp.min(jnp.where(sim >= max_sim, col_ids, k),
                  axis=-1, keepdims=True)                        # (rows, 1)
    onehot = (col_ids == idx).astype(F32)                        # (rows, K)
    quant = jnp.dot(onehot, cb_n, preferred_element_type=F32)    # (rows, D)
    sq_err = sq_err + (r_n - quant) ** 2
    residual = r_n - quant
    idx_cols.append(idx)
  return idx_cols, sq_err


# ----------------------- path 1: fully fused (small N) -----------------------


def _fused_forward_kernel(
    x_in_ref, a_ref, assign_t_ref,
    enc_w_ref, enc_b_ref,
    layer_w_ref, layer_b_ref, cbn_ref,
    head_w_ref, head_b_ref,
    pred_ref, gid_ref, loss_ref,
    *, num_layers, num_quant, codebook_size, commitment_weight):
  n = x_in_ref.shape[0]
  d = enc_w_ref.shape[1]

  # FeatureEncoder: linear node encoder (f32; tiny vs the O(N^2) A@X stream).
  x = (jnp.dot(x_in_ref[...], enc_w_ref[...], preferred_element_type=F32)
       + enc_b_ref[...])

  a = a_ref[...]                         # (N, N) bf16 sym-normalized adjacency
  assign_t = assign_t_ref[...]           # (G, N) f32 one-hot graph assignment

  # Hoisted loop invariants (JAX does not CSE iota / broadcasts).
  col_ids = lax.broadcasted_iota(jnp.int32, (n, codebook_size), 1)
  sq_err = jnp.zeros((n, d), F32)        # single elementwise loss accumulator

  for l in range(num_layers):
    # GCNConvLayer (residual): ReLU(A_norm @ X @ W + b) + X.  Only the A@X
    # contraction runs in bf16 (f32 accumulation); the weight path stays f32.
    ax = jnp.dot(a, x.astype(BF16), preferred_element_type=F32)
    h = (jnp.dot(ax, layer_w_ref[l], preferred_element_type=F32)
         + layer_b_ref[l])
    x = jnp.maximum(h, 0.0) + x

    codebooks = [cbn_ref[l * num_quant + s] for s in range(num_quant)]
    idx_cols, sq_err = _residual_vq(x, codebooks, col_ids, sq_err)

    # global_add_pool of code indices, done per quantizer on already-resident
    # tiles (no node-level lane-1 concatenation); each (G, 1) pooled column is
    # stored straight into gid_ref at a static lane offset.
    for s, idx in enumerate(idx_cols):
      c = l * num_quant + s
      pooled = jnp.dot(assign_t, idx.astype(F32), preferred_element_type=F32)
      # exact: per-graph sums of code ids stay far below 2^24 (f32 int range).
      gid_ref[:, c:c + 1] = pooled.astype(jnp.int32)

  # post_mp: GNNGraphHead = global mean pool + Linear.  Exact divide: counts is
  # a tiny (G, 1) tensor, approx reciprocal would leak error into pred.
  counts = jnp.sum(assign_t, axis=1, keepdims=True)
  graph_emb = (jnp.dot(assign_t, x, preferred_element_type=F32)
               / jnp.maximum(counts, 1.0))
  pred_ref[...] = (jnp.dot(graph_emb, head_w_ref[...],
                           preferred_element_type=F32) + head_b_ref[...])

  # total commit loss = cw * sum_{layer, quantizer} mean(sq_err_lq); one
  # scalar reduction for all layers/quantizers, out via the SMEM scalar path.
  loss_ref[0, 0] = commitment_weight * jnp.sum(sq_err) / float(n * d)


# ------------------------ path 2: row-tiled (large N) ------------------------


def _encoder_kernel(x_in_ref, w_ref, b_ref, x0_ref):
  x0_ref[...] = (jnp.dot(x_in_ref[...], w_ref[...], preferred_element_type=F32)
                 + b_ref[...])


def _gcn_rvq_layer_kernel(a_ref, x_ref, w_ref, b_ref, cbn_ref,
                          x_out_ref, idx_ref, sq_ref,
                          *, tm, num_quant, codebook_size):
  row0 = pl.multiple_of(pl.program_id(0) * tm, tm)
  x_full = x_ref[...]                              # (N, D) f32, VMEM-resident
  x_rows = x_ref[pl.ds(row0, tm), :]               # this tile's own rows

  # GCNConvLayer (residual) on TM rows: dominant O(TM*N*D) bf16 MXU matmul.
  ax = jnp.dot(a_ref[...], x_full.astype(BF16), preferred_element_type=F32)
  h = jnp.dot(ax, w_ref[...], preferred_element_type=F32) + b_ref[...]
  x_new = jnp.maximum(h, 0.0) + x_rows

  col_ids = lax.broadcasted_iota(jnp.int32, (tm, codebook_size), 1)
  codebooks = [cbn_ref[s] for s in range(num_quant)]
  idx_cols, sq_err = _residual_vq(x_new, codebooks, col_ids,
                                  jnp.zeros((tm, x_new.shape[1]), F32))

  x_out_ref[...] = x_new
  for s, idx in enumerate(idx_cols):
    idx_ref[:, s:s + 1] = idx                      # static-lane column store
  # per-node squared-error partial (already summed over D and quantizers);
  # the head kernel turns these partials into the scalar commitment loss.
  sq_ref[...] = jnp.sum(sq_err, axis=-1, keepdims=True)


def _head_pool_kernel(assign_t_ref, x_ref, idx_ref, sq_ref,
                      head_w_ref, head_b_ref,
                      pred_ref, gid_ref, loss_ref,
                      *, num_layers, num_quant, commitment_weight):
  assign_t = assign_t_ref[...]                     # (G, N)
  x = x_ref[...]                                   # (N, D) final node features
  n, d = x.shape

  counts = jnp.sum(assign_t, axis=1, keepdims=True)
  graph_emb = (jnp.dot(assign_t, x, preferred_element_type=F32)
               / jnp.maximum(counts, 1.0))         # exact divide
  pred_ref[...] = (jnp.dot(graph_emb, head_w_ref[...],
                           preferred_element_type=F32) + head_b_ref[...])

  for l in range(num_layers):
    pooled = jnp.dot(assign_t, idx_ref[l].astype(F32),
                     preferred_element_type=F32)   # (G, Q), exact integer sums
    gid_ref[:, l * num_quant:(l + 1) * num_quant] = pooled.astype(jnp.int32)

  loss_ref[0, 0] = commitment_weight * jnp.sum(sq_ref[...]) / float(n * d)


# --------------------------------- wrapper -----------------------------------


def _tpu_vmem_bytes():
  try:
    return int(getattr(pltpu.get_tpu_info(), "vmem_capacity_bytes", 64 << 20))
  except Exception:  # pragma: no cover - conservative fallback (v7x per-TC)
    return 64 << 20


def _largest_row_tile(n, cap_rows, granule=16):
  """Largest divisor of n that is a multiple of `granule` and <= cap_rows."""
  cands = [t for t in range(granule, n + 1, granule)
           if n % t == 0 and t <= cap_rows]
  return max(cands) if cands else n


def custom_gnn_forward(x_in, a_norm_bf16, assign_t, params, *,
                       commitment_weight=0.25, tiled=None, tm=None):
  """Mirrors CustomGNN.forward: returns (pred, total_commit_loss, graph_id).

  tiled=None -> auto: single fused kernel when A_norm comfortably fits VMEM,
  otherwise the row-tiled multi-kernel path.
  """
  n, d_in = x_in.shape
  g = assign_t.shape[0]
  d_out = params["head_w"].shape[1]
  cbs = params["codebooks"]                        # (L, Q, K, D)
  num_layers, num_quant, codebook_size, d = cbs.shape

  # Codebooks are L2-normalized once here (constants of this forward).
  cb_n = _l2_normalize(cbs.reshape(num_layers * num_quant, codebook_size, d))

  phys_vmem = _tpu_vmem_bytes()
  fused_need = n * n * 2 + 6 * n * d * 4 + g * n * 4 + (2 << 20)
  if tiled is None:
    tiled = fused_need > int(0.4 * phys_vmem)

  if not tiled:
    kernel = functools.partial(
        _fused_forward_kernel, num_layers=num_layers, num_quant=num_quant,
        codebook_size=codebook_size, commitment_weight=commitment_weight)
    pred, gid, loss = pl.pallas_call(
        kernel,
        out_shape=(jax.ShapeDtypeStruct((g, d_out), F32),
                   jax.ShapeDtypeStruct((g, num_layers * num_quant), jnp.int32),
                   jax.ShapeDtypeStruct((1, 1), F32)),
        in_specs=[VMEM_SPEC] * 10,
        out_specs=(VMEM_SPEC, VMEM_SPEC, SMEM_SPEC),
        compiler_params=pltpu.CompilerParams(
            vmem_limit_bytes=int(min(max(2 * fused_need, 32 << 20),
                                     0.75 * phys_vmem))),
    )(x_in, a_norm_bf16, assign_t,
      params["enc_w"], params["enc_b"],
      params["layer_w"], params["layer_b"], cb_n,
      params["head_w"], params["head_b"])
    return pred, loss[0, 0], gid

  # ------------------------- row-tiled path (large N) ------------------------
  if tm is None:
    resident = (n * d * 4
                + num_layers * num_quant * codebook_size * d * 4 + (2 << 20))
    budget = max(int(0.6 * phys_vmem) - resident, 1 << 20)
    bytes_per_row = 2 * (n * 2) + 2 * (d * 4) + 256   # dbl-buf A row + outputs
    tm = _largest_row_tile(n, max(16, budget // bytes_per_row))
  assert n % tm == 0, f"row tile {tm} must divide N={n}"

  vmem_limit = int(min(max(2 * tm * n * 2 + n * d * 4 + (8 << 20), 32 << 20),
                       0.75 * phys_vmem))
  cparams = pltpu.CompilerParams(
      dimension_semantics=("parallel",),             # shards v7x's 2 TCs
      vmem_limit_bytes=vmem_limit)
  grid = (n // tm,)

  x = pl.pallas_call(
      _encoder_kernel,
      grid=grid,
      in_specs=[pl.BlockSpec((tm, d_in), lambda i: (i, 0)),
                pl.BlockSpec((d_in, d), lambda i: (0, 0)),
                pl.BlockSpec((1, d), lambda i: (0, 0))],
      out_specs=pl.BlockSpec((tm, d), lambda i: (i, 0)),
      out_shape=jax.ShapeDtypeStruct((n, d), F32),
      compiler_params=cparams,
  )(x_in, params["enc_w"], params["enc_b"])

  idx_list, sq_list = [], []
  for l in range(num_layers):
    layer_kernel = functools.partial(
        _gcn_rvq_layer_kernel, tm=tm, num_quant=num_quant,
        codebook_size=codebook_size)
    x, idx_l, sq_l = pl.pallas_call(
        layer_kernel,
        grid=grid,
        in_specs=[
            pl.BlockSpec((tm, n), lambda i: (i, 0)),       # A row tile (stream)
            pl.BlockSpec((n, d), lambda i: (0, 0)),        # full X, resident
            pl.BlockSpec((d, d), lambda i: (0, 0)),
            pl.BlockSpec((1, d), lambda i: (0, 0)),
            pl.BlockSpec((num_quant, codebook_size, d), lambda i: (0, 0, 0)),
        ],
        out_specs=(pl.BlockSpec((tm, d), lambda i: (i, 0)),
                   pl.BlockSpec((tm, num_quant), lambda i: (i, 0)),
                   pl.BlockSpec((tm, 1), lambda i: (i, 0))),
        out_shape=(jax.ShapeDtypeStruct((n, d), F32),
                   jax.ShapeDtypeStruct((n, num_quant), jnp.int32),
                   jax.ShapeDtypeStruct((n, 1), F32)),
        compiler_params=cparams,
    )(a_norm_bf16, x,
      params["layer_w"][l], params["layer_b"][l],
      cb_n[l * num_quant:(l + 1) * num_quant])
    idx_list.append(idx_l)
    sq_list.append(sq_l)

  idx_stack = jnp.stack(idx_list, axis=0)            # (L, N, Q) int32
  sq_all = jnp.concatenate(sq_list, axis=1)          # (N, L) f32

  head_kernel = functools.partial(
      _head_pool_kernel, num_layers=num_layers, num_quant=num_quant,
      commitment_weight=commitment_weight)
  pred, gid, loss = pl.pallas_call(
      head_kernel,
      out_shape=(jax.ShapeDtypeStruct((g, d_out), F32),
                 jax.ShapeDtypeStruct((g, num_layers * num_quant), jnp.int32),
                 jax.ShapeDtypeStruct((1, 1), F32)),
      in_specs=[VMEM_SPEC] * 6,
      out_specs=(VMEM_SPEC, VMEM_SPEC, SMEM_SPEC),
  )(assign_t, x, idx_stack, sq_all, params["head_w"], params["head_b"])
  return pred, loss[0, 0], gid


# ------------------------------ pure-JAX mirror ------------------------------


def _reference_forward(x_in, a_norm_bf16, assign_t, params,
                       commitment_weight=0.25):
  """Pure-JAX mirror of the kernel math (same dtype policy) for sanity checks."""
  cbs = params["codebooks"]
  num_layers, num_quant, _, d = cbs.shape
  cb_n = _l2_normalize(cbs)
  n = x_in.shape[0]

  x = x_in @ params["enc_w"] + params["enc_b"]
  sq_sum = jnp.float32(0.0)
  gid_cols = []
  for l in range(num_layers):
    ax = jnp.dot(a_norm_bf16, x.astype(jnp.bfloat16),
                 preferred_element_type=jnp.float32)
    h = (jnp.dot(ax, params["layer_w"][l], preferred_element_type=jnp.float32)
         + params["layer_b"][l])
    x = jnp.maximum(h, 0.0) + x
    r = x
    for s in range(num_quant):
      r_n = _l2_normalize(r)
      sim = r_n @ cb_n[l, s].T
      idx = jnp.argmax(sim, axis=-1)
      quant = cb_n[l, s][idx]
      sq_sum = sq_sum + jnp.sum((r_n - quant) ** 2)
      r = r_n - quant
      gid_cols.append(assign_t @ idx.astype(jnp.float32)[:, None])
  gid = jnp.concatenate(gid_cols, axis=1).astype(jnp.int32)
  counts = jnp.sum(assign_t, axis=1, keepdims=True)
  emb = (assign_t @ x) / jnp.maximum(counts, 1.0)
  pred = emb @ params["head_w"] + params["head_b"]
  loss = commitment_weight * sq_sum / (n * d)
  return pred, loss, gid


# ---------------------------------- driver -----------------------------------


def build_norm_adj(edge_src, edge_dst, n):
  a = jnp.zeros((n, n), jnp.float32)
  a = a.at[edge_src, edge_dst].set(1.0)
  a = a.at[edge_dst, edge_src].set(1.0)
  a = a + jnp.eye(n, dtype=jnp.float32)              # self loops
  deg = jnp.sum(a, axis=1)
  d_inv_sqrt = 1.0 / jnp.sqrt(jnp.maximum(deg, 1.0))
  return a * d_inv_sqrt[:, None] * d_inv_sqrt[None, :]


if __name__ == "__main__":
  N = 32          # total nodes (2 ring graphs of 16)
  G = 2           # graphs in the batch
  DIM_IN = 8      # raw node feature dim
  DIM_INNER = 32  # cfg.gnn.dim_inner
  DIM_OUT = 4     # dim_out
  LAYERS_MP = 2   # cfg.gnn.layers_mp
  NUM_Q = 2       # ResidualVectorQuant quantizers per layer
  K = 16          # codebook_size

  key = jax.random.PRNGKey(0)
  keys = jax.random.split(key, 8)

  x_in = jax.random.normal(keys[0], (N, DIM_IN), jnp.float32)

  # two ring graphs of 16 nodes each
  nodes = jnp.arange(N)
  ring = N // G
  edge_src = nodes
  edge_dst = jnp.where(nodes % ring == ring - 1, nodes - (ring - 1), nodes + 1)
  a_norm = build_norm_adj(edge_src, edge_dst, N).astype(jnp.bfloat16)

  batch_vec = jnp.repeat(jnp.arange(G, dtype=jnp.int32), N // G)        # (N,)
  # pre-transposed one-hot assignment (G, N): no transpose inside the kernels
  assign_t = (batch_vec[None, :] == jnp.arange(G)[:, None]).astype(jnp.float32)

  lkeys = jax.random.split(keys[3], 2 * LAYERS_MP)
  params = {
      "enc_w": 0.1 * jax.random.normal(keys[1], (DIM_IN, DIM_INNER), jnp.float32),
      "enc_b": jnp.zeros((1, DIM_INNER), jnp.float32),
      "head_w": 0.1 * jax.random.normal(keys[2], (DIM_INNER, DIM_OUT), jnp.float32),
      "head_b": jnp.zeros((1, DIM_OUT), jnp.float32),
      "layer_w": jnp.stack([
          0.1 * jax.random.normal(lkeys[2 * l], (DIM_INNER, DIM_INNER), jnp.float32)
          for l in range(LAYERS_MP)]),                        # (L, D, D)
      "layer_b": jnp.zeros((LAYERS_MP, 1, DIM_INNER), jnp.float32),
      "codebooks": jnp.stack([
          jax.random.normal(lkeys[2 * l + 1], (NUM_Q, K, DIM_INNER), jnp.float32)
          for l in range(LAYERS_MP)]),                        # (L, Q, K, D)
  }

  # Path 1: fully fused single-program kernel (small-N / overhead-bound path).
  pred_f, loss_f, gid_f = custom_gnn_forward(
      x_in, a_norm, assign_t, params, tiled=False)
  # Path 2: row-tiled grid path (large-N / multi-TensorCore path), forced here
  # with TM=16 so the grid has 2 steps and the tiling machinery is exercised.
  pred_t, loss_t, gid_t = custom_gnn_forward(
      x_in, a_norm, assign_t, params, tiled=True, tm=16)
  jax.block_until_ready((pred_f, loss_f, gid_f, pred_t, loss_t, gid_t))

  assert pred_f.shape == (G, DIM_OUT) and pred_t.shape == (G, DIM_OUT)
  assert gid_f.shape == (G, LAYERS_MP * NUM_Q)
  assert loss_f.shape == ()

  # Both Pallas paths compute identical math -> tight agreement.
  np.testing.assert_allclose(np.asarray(pred_f), np.asarray(pred_t),
                             rtol=1e-5, atol=1e-5)
  np.testing.assert_allclose(float(loss_f), float(loss_t), rtol=1e-5, atol=1e-6)
  assert np.array_equal(np.asarray(gid_f), np.asarray(gid_t))

  # Sanity check against a pure-JAX mirror of the same math / dtype policy.
  pred_r, loss_r, _ = _reference_forward(x_in, a_norm, assign_t, params)
  np.testing.assert_allclose(np.asarray(pred_f), np.asarray(pred_r),
                             rtol=1e-2, atol=1e-3)
  np.testing.assert_allclose(float(loss_f), float(loss_r), rtol=1e-2, atol=1e-3)

  print("KERNEL_OK")
</pallas_src>

<mosaic_0001>
module attributes {stable_mosaic.version = 11 : i64} {
  func.func @_fused_forward_kernel(%arg0: memref<32x8xf32, #tpu.memory_space<vmem>>, %arg1: memref<32x32xbf16, #tpu.memory_space<vmem>>, %arg2: memref<2x32xf32, #tpu.memory_space<vmem>>, %arg3: memref<8x32xf32, #tpu.memory_space<vmem>>, %arg4: memref<1x32xf32, #tpu.memory_space<vmem>>, %arg5: memref<2x32x32xf32, #tpu.memory_space<vmem>>, %arg6: memref<2x1x32xf32, #tpu.memory_space<vmem>>, %arg7: memref<4x16x32xf32, #tpu.memory_space<vmem>>, %arg8: memref<32x4xf32, #tpu.memory_space<vmem>>, %arg9: memref<1x4xf32, #tpu.memory_space<vmem>>, %arg10: memref<2x4xf32, #tpu.memory_space<vmem>>, %arg11: memref<2x4xi32, #tpu.memory_space<vmem>>, %arg12: memref<1x1xf32, #tpu.memory_space<smem>>) attributes {dimension_semantics = [], scalar_prefetch = 0 : i64, scratch_operands = 0 : i64, tpu.core_type = #tpu.core_type<tc>} {
    %c0 = arith.constant 0 : index
    %c0_0 = arith.constant 0 : index
    %0 = vector.load %arg0[%c0, %c0_0] : memref<32x8xf32, #tpu.memory_space<vmem>>, vector<32x8xf32>
    %c0_1 = arith.constant 0 : index
    %c0_2 = arith.constant 0 : index
    %1 = vector.load %arg3[%c0_1, %c0_2] : memref<8x32xf32, #tpu.memory_space<vmem>>, vector<8x32xf32>
    %cst = arith.constant dense<0.000000e+00> : vector<32x32xf32>
    %2 = tpu.matmul %0, %1, %cst {dimension_numbers = #tpu.dot_dimension_numbers<[1], [0], [0], [1], [0, 0, 1, 1], [], []>} : vector<32x8xf32>, vector<8x32xf32>, vector<32x32xf32> -> vector<32x32xf32>
    %c0_3 = arith.constant 0 : index
    %c0_4 = arith.constant 0 : index
    %3 = vector.load %arg4[%c0_3, %c0_4] : memref<1x32xf32, #tpu.memory_space<vmem>>, vector<1x32xf32>
    %4 = vector.broadcast %3 : vector<1x32xf32> to vector<32x32xf32>
    %5 = arith.addf %2, %4 : vector<32x32xf32>
    %c0_5 = arith.constant 0 : index
    %c0_6 = arith.constant 0 : index
    %6 = vector.load %arg1[%c0_5, %c0_6] : memref<32x32xbf16, #tpu.memory_space<vmem>>, vector<32x32xbf16>
    %c0_7 = arith.constant 0 : index
    %c0_8 = arith.constant 0 : index
    %7 = vector.load %arg2[%c0_7, %c0_8] : memref<2x32xf32, #tpu.memory_space<vmem>>, vector<2x32xf32>
    %8 = tpu.iota {dimensions = array<i32: 1>} : vector<32x16xi32>
    %cst_9 = arith.constant 0.000000e+00 : f32
    %9 = vector.broadcast %cst_9 : f32 to vector<32x32xf32>
    %10 = arith.truncf %5 : vector<32x32xf32> to vector<32x32xbf16>
    %cst_10 = arith.constant dense<0.000000e+00> : vector<32x32xf32>
    %11 = tpu.matmul %6, %10, %cst_10 {dimension_numbers = #tpu.dot_dimension_numbers<[1], [0], [0], [1], [0, 0, 1, 1], [], []>} : vector<32x32xbf16>, vector<32x32xbf16>, vector<32x32xf32> -> vector<32x32xf32>
    %c0_11 = arith.constant 0 : index
    %c0_12 = arith.constant 0 : index
    %c0_13 = arith.constant 0 : index
    %12 = vector.load %arg5[%c0_11, %c0_12, %c0_13] : memref<2x32x32xf32, #tpu.memory_space<vmem>>, vector<1x32x32xf32>
    %13 = vector.shape_cast %12 : vector<1x32x32xf32> to vector<32x32xf32>
    %cst_14 = arith.constant dense<0.000000e+00> : vector<32x32xf32>
    %14 = tpu.matmul %11, %13, %cst_14 {dimension_numbers = #tpu.dot_dimension_numbers<[1], [0], [0], [1], [0, 0, 1, 1], [], []>} : vector<32x32xf32>, vector<32x32xf32>, vector<32x32xf32> -> vector<32x32xf32>
    %c0_15 = arith.constant 0 : index
    %c0_16 = arith.constant 0 : index
    %c0_17 = arith.constant 0 : index
    %15 = vector.load %arg6[%c0_15, %c0_16, %c0_17] : memref<2x1x32xf32, #tpu.memory_space<vmem>>, vector<1x1x32xf32>
    %16 = vector.shape_cast %15 : vector<1x1x32xf32> to vector<1x32xf32>
    %17 = vector.broadcast %16 : vector<1x32xf32> to vector<32x32xf32>
    %18 = arith.addf %14, %17 : vector<32x32xf32>
    %cst_18 = arith.constant 0.000000e+00 : f32
    %19 = vector.broadcast %cst_18 : f32 to vector<32x32xf32>
    %20 = arith.maximumf %18, %19 : vector<32x32xf32>
    %21 = arith.addf %20, %5 : vector<32x32xf32>
    %c0_19 = arith.constant 0 : index
    %c0_20 = arith.constant 0 : index
    %c0_21 = arith.constant 0 : index
    %22 = vector.load %arg7[%c0_19, %c0_20, %c0_21] : memref<4x16x32xf32, #tpu.memory_space<vmem>>, vector<1x16x32xf32>
    %23 = vector.shape_cast %22 : vector<1x16x32xf32> to vector<16x32xf32>
    %c1 = arith.constant 1 : index
    %c0_22 = arith.constant 0 : index
    %c0_23 = arith.constant 0 : index
    %24 = vector.load %arg7[%c1, %c0_22, %c0_23] : memref<4x16x32xf32, #tpu.memory_space<vmem>>, vector<1x16x32xf32>
    %25 = vector.shape_cast %24 : vector<1x16x32xf32> to vector<16x32xf32>
    %26 = arith.mulf %21, %21 : vector<32x32xf32>
    %cst_24 = arith.constant dense<0.000000e+00> : vector<32xf32>
    %27 = vector.multi_reduction <add>, %26, %cst_24 [1] : vector<32x32xf32> to vector<32xf32>
    %28 = vector.shape_cast %27 : vector<32xf32> to vector<32x1xf32>
    %cst_25 = arith.constant 9.99999996E-13 : f32
    %29 = vector.broadcast %cst_25 : f32 to vector<32x1xf32>
    %30 = arith.addf %28, %29 : vector<32x1xf32>
    %31 = math.rsqrt %30 : vector<32x1xf32>
    %32 = vector.broadcast %31 : vector<32x1xf32> to vector<32x32xf32>
    %33 = arith.mulf %21, %32 : vector<32x32xf32>
    %cst_26 = arith.constant dense<0.000000e+00> : vector<32x16xf32>
    %34 = tpu.matmul %33, %23, %cst_26 {dimension_numbers = #tpu.dot_dimension_numbers<[1], [1], [0], [0], [0, 0, 1, 0], [], []>} : vector<32x32xf32>, vector<16x32xf32>, vector<32x16xf32> -> vector<32x16xf32>
    %cst_27 = arith.constant dense<0xFF800000> : vector<32xf32>
    %35 = vector.multi_reduction <maximumf>, %34, %cst_27 [1] : vector<32x16xf32> to vector<32xf32>
    %36 = vector.shape_cast %35 : vector<32xf32> to vector<32x1xf32>
    %37 = vector.broadcast %36 : vector<32x1xf32> to vector<32x16xf32>
    %38 = arith.cmpf oge, %34, %37 : vector<32x16xf32>
    %c16_i32 = arith.constant 16 : i32
    %39 = vector.broadcast %c16_i32 : i32 to vector<32x16xi32>
    %40 = arith.select %38, %8, %39 : vector<32x16xi1>, vector<32x16xi32>
    %cst_28 = arith.constant dense<2147483647> : vector<32xi32>
    %41 = vector.multi_reduction <minsi>, %40, %cst_28 [1] : vector<32x16xi32> to vector<32xi32>
    %42 = vector.shape_cast %41 : vector<32xi32> to vector<32x1xi32>
    %43 = vector.broadcast %42 : vector<32x1xi32> to vector<32x16xi32>
    %44 = arith.cmpi eq, %8, %43 : vector<32x16xi32>
    %45 = arith.extui %44 : vector<32x16xi1> to vector<32x16xi32>
    %46 = arith.sitofp %45 : vector<32x16xi32> to vector<32x16xf32>
    %cst_29 = arith.constant dense<0.000000e+00> : vector<32x32xf32>
    %47 = tpu.matmul %46, %23, %cst_29 {dimension_numbers = #tpu.dot_dimension_numbers<[1], [0], [0], [1], [0, 0, 1, 1], [], []>} : vector<32x16xf32>, vector<16x32xf32>, vector<32x32xf32> -> vector<32x32xf32>
    %48 = arith.subf %33, %47 : vector<32x32xf32>
    %49 = arith.mulf %48, %48 : vector<32x32xf32>
    %50 = arith.addf %9, %49 : vector<32x32xf32>
    %51 = arith.subf %33, %47 : vector<32x32xf32>
    %52 = arith.mulf %51, %51 : vector<32x32xf32>
    %cst_30 = arith.constant dense<0.000000e+00> : vector<32xf32>
    %53 = vector.multi_reduction <add>, %52, %cst_30 [1] : vector<32x32xf32> to vector<32xf32>
    %54 = vector.shape_cast %53 : vector<32xf32> to vector<32x1xf32>
    %cst_31 = arith.constant 9.99999996E-13 : f32
    %55 = vector.broadcast %cst_31 : f32 to vector<32x1xf32>
    %56 = arith.addf %54, %55 : vector<32x1xf32>
    %57 = math.rsqrt %56 : vector<32x1xf32>
    %58 = vector.broadcast %57 : vector<32x1xf32> to vector<32x32xf32>
    %59 = arith.mulf %51, %58 : vector<32x32xf32>
    %cst_32 = arith.constant dense<0.000000e+00> : vector<32x16xf32>
    %60 = tpu.matmul %59, %25, %cst_32 {dimension_numbers = #tpu.dot_dimension_numbers<[1], [1], [0], [0], [0, 0, 1, 0], [], []>} : vector<32x32xf32>, vector<16x32xf32>, vector<32x16xf32> -> vector<32x16xf32>
    %cst_33 = arith.constant dense<0xFF800000> : vector<32xf32>
    %61 = vector.multi_reduction <maximumf>, %60, %cst_33 [1] : vector<32x16xf32> to vector<32xf32>
    %62 = vector.shape_cast %61 : vector<32xf32> to vector<32x1xf32>
    %63 = vector.broadcast %62 : vector<32x1xf32> to vector<32x16xf32>
    %64 = arith.cmpf oge, %60, %63 : vector<32x16xf32>
    %c16_i32_34 = arith.constant 16 : i32
    %65 = vector.broadcast %c16_i32_34 : i32 to vector<32x16xi32>
    %66 = arith.select %64, %8, %65 : vector<32x16xi1>, vector<32x16xi32>
    %cst_35 = arith.constant dense<2147483647> : vector<32xi32>
    %67 = vector.multi_reduction <minsi>, %66, %cst_35 [1] : vector<32x16xi32> to vector<32xi32>
    %68 = vector.shape_cast %67 : vector<32xi32> to vector<32x1xi32>
    %69 = vector.broadcast %68 : vector<32x1xi32> to vector<32x16xi32>
    %70 = arith.cmpi eq, %8, %69 : vector<32x16xi32>
    %71 = arith.extui %70 : vector<32x16xi1> to vector<32x16xi32>
    %72 = arith.sitofp %71 : vector<32x16xi32> to vector<32x16xf32>
    %cst_36 = arith.constant dense<0.000000e+00> : vector<32x32xf32>
    %73 = tpu.matmul %72, %25, %cst_36 {dimension_numbers = #tpu.dot_dimension_numbers<[1], [0], [0], [1], [0, 0, 1, 1], [], []>} : vector<32x16xf32>, vector<16x32xf32>, vector<32x32xf32> -> vector<32x32xf32>
    %74 = arith.subf %59, %73 : vector<32x32xf32>
    %75 = arith.mulf %74, %74 : vector<32x32xf32>
    %76 = arith.addf %50, %75 : vector<32x32xf32>
    %77 = arith.sitofp %42 : vector<32x1xi32> to vector<32x1xf32>
    %cst_37 = arith.constant dense<0.000000e+00> : vector<2x1xf32>
    %78 = tpu.matmul %7, %77, %cst_37 {dimension_numbers = #tpu.dot_dimension_numbers<[1], [0], [0], [1], [0, 0, 1, 1], [], []>} : vector<2x32xf32>, vector<32x1xf32>, vector<2x1xf32> -> vector<2x1xf32>
    %79 = arith.fptosi %78 : vector<2x1xf32> to vector<2x1xi32>
    %c0_38 = arith.constant 0 : index
    %c0_39 = arith.constant 0 : index
    %80 = vector.load %arg11[%c0_38, %c0_39] : memref<2x4xi32, #tpu.memory_space<vmem>>, vector<2x1xi32>
    tpu.vector_store %arg11[%c0_38, %c0_39], %79 {strides = array<i32>} : memref<2x4xi32, #tpu.memory_space<vmem>>, vector<2x1xi32>,
    %81 = arith.sitofp %68 : vector<32x1xi32> to vector<32x1xf32>
    %cst_40 = arith.constant dense<0.000000e+00> : vector<2x1xf32>
    %82 = tpu.matmul %7, %81, %cst_40 {dimension_numbers = #tpu.dot_dimension_numbers<[1], [0], [0], [1], [0, 0, 1, 1], [], []>} : vector<2x32xf32>, vector<32x1xf32>, vector<2x1xf32> -> vector<2x1xf32>
    %83 = arith.fptosi %82 : vector<2x1xf32> to vector<2x1xi32>
    %c0_41 = arith.constant 0 : index
    %c1_42 = arith.constant 1 : index
    %84 = vector.load %arg11[%c0_41, %c1_42] : memref<2x4xi32, #tpu.memory_space<vmem>>, vector<2x1xi32>
    tpu.vector_store %arg11[%c0_41, %c1_42], %83 {strides = array<i32>} : memref<2x4xi32, #tpu.memory_space<vmem>>, vector<2x1xi32>,
    %85 = arith.truncf %21 : vector<32x32xf32> to vector<32x32xbf16>
    %cst_43 = arith.constant dense<0.000000e+00> : vector<32x32xf32>
    %86 = tpu.matmul %6, %85, %cst_43 {dimension_numbers = #tpu.dot_dimension_numbers<[1], [0], [0], [1], [0, 0, 1, 1], [], []>} : vector<32x32xbf16>, vector<32x32xbf16>, vector<32x32xf32> -> vector<32x32xf32>
    %c1_44 = arith.constant 1 : index
    %c0_45 = arith.constant 0 : index
    %c0_46 = arith.constant 0 : index
    %87 = vector.load %arg5[%c1_44, %c0_45, %c0_46] : memref<2x32x32xf32, #tpu.memory_space<vmem>>, vector<1x32x32xf32>
    %88 = vector.shape_cast %87 : vector<1x32x32xf32> to vector<32x32xf32>
    %cst_47 = arith.constant dense<0.000000e+00> : vector<32x32xf32>
    %89 = tpu.matmul %86, %88, %cst_47 {dimension_numbers = #tpu.dot_dimension_numbers<[1], [0], [0], [1], [0, 0, 1, 1], [], []>} : vector<32x32xf32>, vector<32x32xf32>, vector<32x32xf32> -> vector<32x32xf32>
    %c1_48 = arith.constant 1 : index
    %c0_49 = arith.constant 0 : index
    %c0_50 = arith.constant 0 : index
    %90 = vector.load %arg6[%c1_48, %c0_49, %c0_50] : memref<2x1x32xf32, #tpu.memory_space<vmem>>, vector<1x1x32xf32>
    %91 = vector.shape_cast %90 : vector<1x1x32xf32> to vector<1x32xf32>
    %92 = vector.broadcast %91 : vector<1x32xf32> to vector<32x32xf32>
    %93 = arith.addf %89, %92 : vector<32x32xf32>
    %cst_51 = arith.constant 0.000000e+00 : f32
    %94 = vector.broadcast %cst_51 : f32 to vector<32x32xf32>
    %95 = arith.maximumf %93, %94 : vector<32x32xf32>
    %96 = arith.addf %95, %21 : vector<32x32xf32>
    %c2 = arith.constant 2 : index
    %c0_52 = arith.constant 0 : index
    %c0_53 = arith.constant 0 : index
    %97 = vector.load %arg7[%c2, %c0_52, %c0_53] : memref<4x16x32xf32, #tpu.memory_space<vmem>>, vector<1x16x32xf32>
    %98 = vector.shape_cast %97 : vector<1x16x32xf32> to vector<16x32xf32>
    %c3 = arith.constant 3 : index
    %c0_54 = arith.constant 0 : index
    %c0_55 = arith.constant 0 : index
    %99 = vector.load %arg7[%c3, %c0_54, %c0_55] : memref<4x16x32xf32, #tpu.memory_space<vmem>>, vector<1x16x32xf32>
    %100 = vector.shape_cast %99 : vector<1x16x32xf32> to vector<16x32xf32>
    %101 = arith.mulf %96, %96 : vector<32x32xf32>
    %cst_56 = arith.constant dense<0.000000e+00> : vector<32xf32>
    %102 = vector.multi_reduction <add>, %101, %cst_56 [1] : vector<32x32xf32> to vector<32xf32>
    %103 = vector.shape_cast %102 : vector<32xf32> to vector<32x1xf32>
    %cst_57 = arith.constant 9.99999996E-13 : f32
    %104 = vector.broadcast %cst_57 : f32 to vector<32x1xf32>
    %105 = arith.addf %103, %104 : vector<32x1xf32>
    %106 = math.rsqrt %105 : vector<32x1xf32>
    %107 = vector.broadcast %106 : vector<32x1xf32> to vector<32x32xf32>
    %108 = arith.mulf %96, %107 : vector<32x32xf32>
    %cst_58 = arith.constant dense<0.000000e+00> : vector<32x16xf32>
    %109 = tpu.matmul %108, %98, %cst_58 {dimension_numbers = #tpu.dot_dimension_numbers<[1], [1], [0], [0], [0, 0, 1, 0], [], []>} : vector<32x32xf32>, vector<16x32xf32>, vector<32x16xf32> -> vector<32x16xf32>
    %cst_59 = arith.constant dense<0xFF800000> : vector<32xf32>
    %110 = vector.multi_reduction <maximumf>, %109, %cst_59 [1] : vector<32x16xf32> to vector<32xf32>
    %111 = vector.shape_cast %110 : vector<32xf32> to vector<32x1xf32>
    %112 = vector.broadcast %111 : vector<32x1xf32> to vector<32x16xf32>
    %113 = arith.cmpf oge, %109, %112 : vector<32x16xf32>
    %c16_i32_60 = arith.constant 16 : i32
    %114 = vector.broadcast %c16_i32_60 : i32 to vector<32x16xi32>
    %115 = arith.select %113, %8, %114 : vector<32x16xi1>, vector<32x16xi32>
    %cst_61 = arith.constant dense<2147483647> : vector<32xi32>
    %116 = vector.multi_reduction <minsi>, %115, %cst_61 [1] : vector<32x16xi32> to vector<32xi32>
    %117 = vector.shape_cast %116 : vector<32xi32> to vector<32x1xi32>
    %118 = vector.broadcast %117 : vector<32x1xi32> to vector<32x16xi32>
    %119 = arith.cmpi eq, %8, %118 : vector<32x16xi32>
    %120 = arith.extui %119 : vector<32x16xi1> to vector<32x16xi32>
    %121 = arith.sitofp %120 : vector<32x16xi32> to vector<32x16xf32>
    %cst_62 = arith.constant dense<0.000000e+00> : vector<32x32xf32>
    %122 = tpu.matmul %121, %98, %cst_62 {dimension_numbers = #tpu.dot_dimension_numbers<[1], [0], [0], [1], [0, 0, 1, 1], [], []>} : vector<32x16xf32>, vector<16x32xf32>, vector<32x32xf32> -> vector<32x32xf32>
    %123 = arith.subf %108, %122 : vector<32x32xf32>
    %124 = arith.mulf %123, %123 : vector<32x32xf32>
    %125 = arith.addf %76, %124 : vector<32x32xf32>
    %126 = arith.subf %108, %122 : vector<32x32xf32>
    %127 = arith.mulf %126, %126 : vector<32x32xf32>
    %cst_63 = arith.constant dense<0.000000e+00> : vector<32xf32>
    %128 = vector.multi_reduction <add>, %127, %cst_63 [1] : vector<32x32xf32> to vector<32xf32>
    %129 = vector.shape_cast %128 : vector<32xf32> to vector<32x1xf32>
    %cst_64 = arith.constant 9.99999996E-13 : f32
    %130 = vector.broadcast %cst_64 : f32 to vector<32x1xf32>
    %131 = arith.addf %129, %130 : vector<32x1xf32>
    %132 = math.rsqrt %131 : vector<32x1xf32>
    %133 = vector.broadcast %132 : vector<32x1xf32> to vector<32x32xf32>
    %134 = arith.mulf %126, %133 : vector<32x32xf32>
    %cst_65 = arith.constant dense<0.000000e+00> : vector<32x16xf32>
    %135 = tpu.matmul %134, %100, %cst_65 {dimension_numbers = #tpu.dot_dimension_numbers<[1], [1], [0], [0], [0, 0, 1, 0], [], []>} : vector<32x32xf32>, vector<16x32xf32>, vector<32x16xf32> -> vector<32x16xf32>
    %cst_66 = arith.constant dense<0xFF800000> : vector<32xf32>
    %136 = vector.multi_reduction <maximumf>, %135, %cst_66 [1] : vector<32x16xf32> to vector<32xf32>
    %137 = vector.shape_cast %136 : vector<32xf32> to vector<32x1xf32>
    %138 = vector.broadcast %137 : vector<32x1xf32> to vector<32x16xf32>
    %139 = arith.cmpf oge, %135, %138 : vector<32x16xf32>
    %c16_i32_67 = arith.constant 16 : i32
    %140 = vector.broadcast %c16_i32_67 : i32 to vector<32x16xi32>
    %141 = arith.select %139, %8, %140 : vector<32x16xi1>, vector<32x16xi32>
    %cst_68 = arith.constant dense<2147483647> : vector<32xi32>
    %142 = vector.multi_reduction <minsi>, %141, %cst_68 [1] : vector<32x16xi32> to vector<32xi32>
    %143 = vector.shape_cast %142 : vector<32xi32> to vector<32x1xi32>
    %144 = vector.broadcast %143 : vector<32x1xi32> to vector<32x16xi32>
    %145 = arith.cmpi eq, %8, %144 : vector<32x16xi32>
    %146 = arith.extui %145 : vector<32x16xi1> to vector<32x16xi32>
    %147 = arith.sitofp %146 : vector<32x16xi32> to vector<32x16xf32>
    %cst_69 = arith.constant dense<0.000000e+00> : vector<32x32xf32>
    %148 = tpu.matmul %147, %100, %cst_69 {dimension_numbers = #tpu.dot_dimension_numbers<[1], [0], [0], [1], [0, 0, 1, 1], [], []>} : vector<32x16xf32>, vector<16x32xf32>, vector<32x32xf32> -> vector<32x32xf32>
    %149 = arith.subf %134, %148 : vector<32x32xf32>
    %150 = arith.mulf %149, %149 : vector<32x32xf32>
    %151 = arith.addf %125, %150 : vector<32x32xf32>
    %152 = arith.sitofp %117 : vector<32x1xi32> to vector<32x1xf32>
    %cst_70 = arith.constant dense<0.000000e+00> : vector<2x1xf32>
    %153 = tpu.matmul %7, %152, %cst_70 {dimension_numbers = #tpu.dot_dimension_numbers<[1], [0], [0], [1], [0, 0, 1, 1], [], []>} : vector<2x32xf32>, vector<32x1xf32>, vector<2x1xf32> -> vector<2x1xf32>
    %154 = arith.fptosi %153 : vector<2x1xf32> to vector<2x1xi32>
    %c0_71 = arith.constant 0 : index
    %c2_72 = arith.constant 2 : index
    %155 = vector.load %arg11[%c0_71, %c2_72] : memref<2x4xi32, #tpu.memory_space<vmem>>, vector<2x1xi32>
    tpu.vector_store %arg11[%c0_71, %c2_72], %154 {strides = array<i32>} : memref<2x4xi32, #tpu.memory_space<vmem>>, vector<2x1xi32>,
    %156 = arith.sitofp %143 : vector<32x1xi32> to vector<32x1xf32>
    %cst_73 = arith.constant dense<0.000000e+00> : vector<2x1xf32>
    %157 = tpu.matmul %7, %156, %cst_73 {dimension_numbers = #tpu.dot_dimension_numbers<[1], [0], [0], [1], [0, 0, 1, 1], [], []>} : vector<2x32xf32>, vector<32x1xf32>, vector<2x1xf32> -> vector<2x1xf32>
    %158 = arith.fptosi %157 : vector<2x1xf32> to vector<2x1xi32>
    %c0_74 = arith.constant 0 : index
    %c3_75 = arith.constant 3 : index
    %159 = vector.load %arg11[%c0_74, %c3_75] : memref<2x4xi32, #tpu.memory_space<vmem>>, vector<2x1xi32>
    tpu.vector_store %arg11[%c0_74, %c3_75], %158 {strides = array<i32>} : memref<2x4xi32, #tpu.memory_space<vmem>>, vector<2x1xi32>,
    %cst_76 = arith.constant dense<0.000000e+00> : vector<2xf32>
    %160 = vector.multi_reduction <add>, %7, %cst_76 [1] : vector<2x32xf32> to vector<2xf32>
    %161 = vector.shape_cast %160 : vector<2xf32> to vector<2x1xf32>
    %cst_77 = arith.constant dense<0.000000e+00> : vector<2x32xf32>
    %162 = tpu.matmul %7, %96, %cst_77 {dimension_numbers = #tpu.dot_dimension_numbers<[1], [0], [0], [1], [0, 0, 1, 1], [], []>} : vector<2x32xf32>, vector<32x32xf32>, vector<2x32xf32> -> vector<2x32xf32>
    %cst_78 = arith.constant 1.000000e+00 : f32
    %163 = vector.broadcast %cst_78 : f32 to vector<2x1xf32>
    %164 = arith.maximumf %161, %163 : vector<2x1xf32>
    %165 = vector.broadcast %164 : vector<2x1xf32> to vector<2x32xf32>
    %166 = arith.divf %162, %165 : vector<2x32xf32>
    %c0_79 = arith.constant 0 : index
    %c0_80 = arith.constant 0 : index
    %167 = vector.load %arg8[%c0_79, %c0_80] : memref<32x4xf32, #tpu.memory_space<vmem>>, vector<32x4xf32>
    %cst_81 = arith.constant dense<0.000000e+00> : vector<2x4xf32>
    %168 = tpu.matmul %166, %167, %cst_81 {dimension_numbers = #tpu.dot_dimension_numbers<[1], [0], [0], [1], [0, 0, 1, 1], [], []>} : vector<2x32xf32>, vector<32x4xf32>, vector<2x4xf32> -> vector<2x4xf32>
    %c0_82 = arith.constant 0 : index
    %c0_83 = arith.constant 0 : index
    %169 = vector.load %arg9[%c0_82, %c0_83] : memref<1x4xf32, #tpu.memory_space<vmem>>, vector<1x4xf32>
    %170 = vector.broadcast %169 : vector<1x4xf32> to vector<2x4xf32>
    %171 = arith.addf %168, %170 : vector<2x4xf32>
    %c0_84 = arith.constant 0 : index
    %c0_85 = arith.constant 0 : index
    %172 = vector.load %arg10[%c0_84, %c0_85] : memref<2x4xf32, #tpu.memory_space<vmem>>, vector<2x4xf32>
    tpu.vector_store %arg10[%c0_84, %c0_85], %171 {strides = array<i32>} : memref<2x4xf32, #tpu.memory_space<vmem>>, vector<2x4xf32>,
    %173 = vector.shape_cast %151 : vector<32x32xf32> to vector<1x32x32xf32>
    %cst_86 = arith.constant dense<0.000000e+00> : vector<1xf32>
    %174 = vector.multi_reduction <add>, %173, %cst_86 [1, 2] : vector<1x32x32xf32> to vector<1xf32>
    %175 = vector.shape_cast %174 : vector<1xf32> to vector<1x1x1xf32>
    %176 = vector.extract %175[0, 0, 0] : f32 from vector<1x1x1xf32>
    %cst_87 = arith.constant 2.500000e-01 : f32
    %177 = arith.mulf %cst_87, %176 : f32
    %cst_88 = arith.constant 1.024000e+03 : f32
    %178 = arith.divf %177, %cst_88 : f32
    %c0_89 = arith.constant 0 : index
    %c0_90 = arith.constant 0 : index
    %179 = memref.load %arg12[%c0_89, %c0_90] : memref<1x1xf32, #tpu.memory_space<smem>>
    memref.store %178, %arg12[%c0_89, %c0_90] : memref<1x1xf32, #tpu.memory_space<smem>>
    return
  }
}

</mosaic_0001>

<llo_original>
// kernel: tpu_custom_call.1
$region0: #{tpu_custom_call.1}
  #allocation0 [shape = 'u32[]', space=smem, size = 0x4, offset = 0x4, fixed_abs, tag = 'smem constant byte address 0x4 - core index']
  #allocation1 [shape = 'u32[144,128]{1,0:T(1,128)}', space=vmem, size = 0x12000, scoped, tag = 'internal scratch']
  %s0 = inlined_call_operand.vmem [shape: f32[32,8], index: 0, kind: input, shape index: {}]
  %s1 = inlined_call_operand.vmem [shape: bf16[32,32], index: 1, kind: input, shape index: {}]
  %s2 = inlined_call_operand.vmem [shape: f32[2,32], index: 2, kind: input, shape index: {}]
  %s3 = inlined_call_operand.vmem [shape: f32[8,32], index: 3, kind: input, shape index: {}]
  %s4 = inlined_call_operand.vmem [shape: f32[1,32], index: 4, kind: input, shape index: {}]
  %s5 = inlined_call_operand.vmem [shape: f32[2,32,32], index: 5, kind: input, shape index: {}]
  %s6 = inlined_call_operand.vmem [shape: f32[2,1,32], index: 6, kind: input, shape index: {}]
  %s7 = inlined_call_operand.hbm [shape: f32[4,16,32], index: 7, kind: input, shape index: {}]
  %s8 = inlined_call_operand.vmem [shape: f32[32,4], index: 8, kind: input, shape index: {}]
  %s9 = inlined_call_operand.vmem [shape: f32[1,4], index: 9, kind: input, shape index: {}]
  %s10 = inlined_call_operand.hbm [shape: f32[2,4], index: 10, kind: output, shape index: {0}]
  %s11 = inlined_call_operand.hbm [shape: s32[2,4], index: 11, kind: output, shape index: {1}]
  %s12 = inlined_call_operand.hbm [shape: f32[1,1], index: 12, kind: output, shape index: {2}]
  %13 = xla_tuple %s10, %s11, %s12
  %s14 = sld [smem:[#allocation0]]
  $region70: #{tpu_custom_call.1} parent=0
    _
  %s16 = ssub.s32 1, %s14
  %s17 = scalar_select 0, %s16, %s14
  $region1: #{tpu_custom_call.1} parent=0
    #allocation2 [shape = 'u8[32768]{0}', space=vmem, size = 0x8000, scoped, tag = 'input window, operand 7, single buffered']
    #allocation3 [shape = 's32[1]{0}', space=sflag, size = 0x4, scoped, tag = 'scoped memory for tpu_custom_call.1']
    #allocation4 [shape = 's32[1]{0}', space=sflag, size = 0x4, scoped, tag = 'scoped memory for tpu_custom_call.1']
    #allocation5 [shape = 's32[1]{0}', space=sflag, size = 0x4, scoped, tag = 'scoped memory for tpu_custom_call.1']
    #allocation6 [shape = 'u8[1024]{0}', space=vmem, size = 0x400, scoped, tag = 'output window, operand 0, single buffered']
    #allocation7 [shape = 'u8[1024]{0}', space=vmem, size = 0x400, scoped, tag = 'output window, operand 1, single buffered']
    #allocation8 [shape = 's32[1]{0}', space=sflag, size = 0x4, scoped, tag = 'scoped memory for tpu_custom_call.1']
    #allocation9 [shape = 'u8[512]{0}', space=smem, size = 0x200, scoped, tag = 'output window, operand 2, single buffered']
    %18 = vsyncpa [#allocation3], 0
    %19 = vsyncpa [#allocation4], 0
    %20 = vsyncpa [#allocation8], 0
    %21 = vsyncpa [#allocation5], 0
    // Predicated region
    $region2: #{tpu_custom_call.1} parent=1 // pred_check
      _
    $region3: #{tpu_custom_call.1} parent=1 // pred_check_branch
      %23 = sbr.rel (0) target = $region5
    $region4: #{tpu_custom_call.1} parent=1 // pred_region
      _
    $region5: #{tpu_custom_call.1} parent=1 // pred_fallthru
      _
    // Predicated region
    $region6: #{tpu_custom_call.1} parent=1 // pred_check
      _
    $region7: #{tpu_custom_call.1} parent=1 // pred_check_branch
      %25 = sbr.rel (0) target = $region9
    $region8: #{tpu_custom_call.1} parent=1 // pred_region
      _
    $region9: #{tpu_custom_call.1} parent=1 // pred_fallthru
      _
    // Predicated region
    $region10: #{tpu_custom_call.1} parent=1 // pred_check
      _
    $region11: #{tpu_custom_call.1} parent=1 // pred_check_branch
      %27 = sbr.rel (0) target = $region13
    $region12: #{tpu_custom_call.1} parent=1 // pred_region
      _
    $region13: #{tpu_custom_call.1} parent=1 // pred_fallthru
      _
    // Predicated region
    $region14: #{tpu_custom_call.1} parent=1 // pred_check
      _
    $region15: #{tpu_custom_call.1} parent=1 // pred_check_branch
      %29 = sbr.rel (0) target = $region17
    $region16: #{tpu_custom_call.1} parent=1 // pred_region
      _
    $region17: #{tpu_custom_call.1} parent=1 // pred_fallthru
      _
    // Predicated region
    $region18: #{tpu_custom_call.1} parent=1 // pred_check
      _
    $region19: #{tpu_custom_call.1} parent=1 // pred_check_branch
      %31 = sbr.rel (0) target = $region21
    $region20: #{tpu_custom_call.1} parent=1 // pred_region
      _
    $region21: #{tpu_custom_call.1} parent=1 // pred_fallthru
      _
    // Predicated region
    $region22: #{tpu_custom_call.1} parent=1 // pred_check
      _
    $region23: #{tpu_custom_call.1} parent=1 // pred_check_branch
      %33 = sbr.rel (0) target = $region25
    $region24: #{tpu_custom_call.1} parent=1 // pred_region
      _
    $region25: #{tpu_custom_call.1} parent=1 // pred_fallthru
      _
    // Predicated region
    $region26: #{tpu_custom_call.1} parent=1 // pred_check
      _
    $region27: #{tpu_custom_call.1} parent=1 // pred_check_branch
      %35 = sbr.rel (0) target = $region29
    $region28: #{tpu_custom_call.1} parent=1 // pred_region
      _
    $region29: #{tpu_custom_call.1} parent=1 // pred_fallthru
      _
    // Predicated region
    $region30: #{tpu_custom_call.1} parent=1 // pred_check
      _
    $region31: #{tpu_custom_call.1} parent=1 // pred_check_branch
      %37 = sbr.rel (0) target = $region33
    $region32: #{tpu_custom_call.1} parent=1 // pred_region
      %s39 = ssub.s32 1024, 1024
      %40 = vsyncadd [#allocation3], %s39
      %s41 = sshll.u32 [#allocation2], 4
      %s42 = int_to_ptr.vmem [resolvable:$true] %s41
      %47 = dma.hbm_to_vmem [thread:$0]  %s7, 1024, %s42, [#allocation3], 128, 128, 8
    $region33: #{tpu_custom_call.1} parent=1 // pred_fallthru
      _
    // Predicated region
    $region34: #{tpu_custom_call.1} parent=1 // pred_check
      _
    $region35: #{tpu_custom_call.1} parent=1 // pred_check_branch
      %49 = sbr.rel (0) target = $region37
    $region36: #{tpu_custom_call.1} parent=1 // pred_region
      _
    $region37: #{tpu_custom_call.1} parent=1 // pred_fallthru
      _
    // Predicated region
    $region38: #{tpu_custom_call.1} parent=1 // pred_check
      _
    $region39: #{tpu_custom_call.1} parent=1 // pred_check_branch
      %51 = sbr.rel (0) target = $region41
    $region40: #{tpu_custom_call.1} parent=1 // pred_region
      _
    $region41: #{tpu_custom_call.1} parent=1 // pred_fallthru
      _
    // Predicated region
    $region42: #{tpu_custom_call.1} parent=1 // pred_check
      _
    $region43: #{tpu_custom_call.1} parent=1 // pred_check_branch
      %53 = sbr.rel (0) target = $region45
    $region44: #{tpu_custom_call.1} parent=1 // pred_region
      %54 = dma.done [#allocation3], 1024
    $region45: #{tpu_custom_call.1} parent=1 // pred_fallthru
      _
    %v56 = vld [vmem:[%s0] sm:$0xff]
    %v57 = vld [vmem:[%s0 + $0x8] sm:$0xff]
    %v58 = vld [vmem:[%s0 + $0x10] sm:$0xff]
    %v59 = vld [vmem:[%s0 + $0x18] sm:$0xff]
    %v60 = vld [vmem:[%s3] sm:$0xff]
    %v61 = vld [vmem:[%s4] sm:$0x1]
    %v63 = vlaneseq
    %v64 = vshrl.u32 %v63, 7
    %v65 = vsub.s32 0, %v64
    %v66 = vrot.slane %v61, %v65
    %vm68 = vcmask 64512
    %v70 = vsel %vm68, %v56, 0
    %v73 = vsel %vm68, %v57, 0
    %v76 = vsel %vm68, %v58, 0
    %v79 = vsel %vm68, %v59, 0
    %81 = vmatprep.subr.mxu0 0.0
    %82 = vmatpush1.msra.mxu0 %v60
    %83 = vmatprep.subr.mxu0 0.0
    %84 = vmatpush1.msra.mxu0 0.0
    %85 = vmatprep.subr.mxu0 0.0
    %86 = vmatpush1.msra.mxu0 0.0
    %87 = vmatprep.subr.mxu0 0.0
    %88 = vmatpush1.msra.mxu0 0.0
    %89 = vmatprep.subr.mxu0 0.0
    %90 = vmatpush1.msra.mxu0 0.0
    %91 = vmatprep.subr.mxu0 0.0
    %92 = vmatpush1.msra.mxu0 0.0
    %93 = vmatprep.subr.mxu0 0.0
    %94 = vmatpush1.msra.mxu0 0.0
    %95 = vmatprep.subr.mxu0 0.0
    %96 = vmatpush1.msra.mxu0 0.0
    %97 = vmatprep.subr.mxu0 0.0
    %98 = vmatpush1.msra.mxu0 0.0
    %99 = vmatprep.subr.mxu0 0.0
    %100 = vmatpush1.msra.mxu0 0.0
    %101 = vmatprep.subr.mxu0 0.0
    %102 = vmatpush1.msra.mxu0 0.0
    %103 = vmatprep.subr.mxu0 0.0
    %104 = vmatpush1.msra.mxu0 0.0
    %105 = vmatprep.subr.mxu0 0.0
    %106 = vmatpush1.msra.mxu0 0.0
    %107 = vmatprep.subr.mxu0 0.0
    %108 = vmatpush1.msra.mxu0 0.0
    %109 = vmatprep.subr.mxu0 0.0
    %110 = vmatpush1.msra.mxu0 0.0
    %111 = vmatprep.subr.mxu0 0.0
    %112 = vmatpush1.msra.mxu0 0.0
    %113 = vmatprep.subr.mxu0 0.0
    %114 = vmatpush1.msra.mxu0 0.0
    %115 = vmatprep.subr.mxu0 0.0
    %116 = vmatpush1.msra.mxu0 0.0
    %117 = vmatprep.subr.mxu0 0.0
    %118 = vmatpush1.msra.mxu0 0.0
    %119 = vmatprep.subr.mxu0 0.0
    %120 = vmatpush1.msra.mxu0 0.0
    %121 = vmatprep.subr.mxu0 0.0
    %122 = vmatpush1.msra.mxu0 0.0
    %123 = vmatprep.subr.mxu0 0.0
    %124 = vmatpush1.msra.mxu0 0.0
    %125 = vmatprep.subr.mxu0 0.0
    %126 = vmatpush1.msra.mxu0 0.0
    %127 = vmatprep.subr.mxu0 0.0
    %128 = vmatpush1.msra.mxu0 0.0
    %129 = vmatprep.subr.mxu0 0.0
    %130 = vmatpush1.msra.mxu0 0.0
    %131 = vmatprep.subr.mxu0 0.0
    %132 = vmatpush1.msra.mxu0 0.0
    %133 = vmatprep.subr.mxu0 0.0
    %134 = vmatpush1.msra.mxu0 0.0
    %135 = vmatprep.subr.mxu0 0.0
    %136 = vmatpush1.msra.mxu0 0.0
    %137 = vmatprep.subr.mxu0 0.0
    %138 = vmatpush1.msra.mxu0 0.0
    %139 = vmatprep.subr.mxu0 0.0
    %140 = vmatpush1.msra.mxu0 0.0
    %141 = vmatprep.subr.mxu0 0.0
    %142 = vmatpush1.msra.mxu0 0.0
    %143 = vmatprep.subr.mxu0 0.0
    %144 = vmatpush1.msra.mxu0 0.0
    %145 = vmatprep.mubr.f32.mxu0 0.0
    %146 = vmatmul.mubr.f32.gmra.mrb[0].mxu0 %v70
    %v147 = vpop.f32.mrb[0].mxu0
    %v148 = vadd.f32 %v66, %v147
    %v149 = vpop.f32.mrb[0].mxu0
    %150 = vmatprep.mubr.f32.mxu0 0.0
    %151 = vmatmul.mubr.f32.gmra.mrb[0].mxu0 %v73
    %v152 = vpop.f32.mrb[0].mxu0
    %v153 = vadd.f32 %v66, %v152
    %v154 = vpop.f32.mrb[0].mxu0
    %155 = vmatprep.mubr.f32.mxu0 0.0
    %156 = vmatmul.mubr.f32.gmra.mrb[0].mxu0 %v76
    %v157 = vpop.f32.mrb[0].mxu0
    %v158 = vadd.f32 %v66, %v157
    %v159 = vpop.f32.mrb[0].mxu0
    %160 = vmatprep.mubr.f32.mxu0 0.0
    %161 = vmatmul.mubr.f32.gmra.mrb[0].mxu0 %v79
    %v162 = vpop.f32.mrb[0].mxu0
    %v163 = vadd.f32 %v66, %v162
    %v164 = vpop.f32.mrb[0].mxu0
    %165 = vdwg.mxu0
    %v166 = vld [vmem:[%s1] sm:$0xf]
    %v167 = vld [vmem:[%s1 + $0x4] sm:$0xf]
    %v168 = vld [vmem:[%s1 + $0x8] sm:$0xf]
    %v169 = vld [vmem:[%s1 + $0xc] sm:$0xf]
    %v170 = vld [vmem:[%s2] sm:$0x3]
    %v171 = vlaneseq
    %v172 = vand.u32 %v171, 127
    %v173 = vpack.c.bf16 %v153, %v148
    %v174 = vpack.c.bf16 %v163, %v158
    %v179 = vunpack.c.l.b16 %v166
    %v180 = vunpack.c.l.b16 %v167
    %v181 = vunpack.c.l.b16 %v168
    %v182 = vunpack.c.l.b16 %v169
    %v183 = vpack.c.b16 %v180, %v179
    %v184 = vpack.c.b16 %v182, %v181
    %vm185 = vcmask 261120
    %v187 = vsel %vm185, %v183, 0
    %v190 = vsel %vm185, %v184, 0
    %192 = vmatprep.subr.bf16.mxu0 0
    %193 = vmatpush1.bf16.msra.mxu0 %v173
    %194 = vmatprep.subr.bf16.mxu0 0
    %195 = vmatpush1.bf16.msra.mxu0 %v174
    %196 = vmatprep.subr.bf16.mxu0 0
    %197 = vmatpush1.bf16.msra.mxu0 0
    %198 = vmatprep.subr.bf16.mxu0 0
    %199 = vmatpush1.bf16.msra.mxu0 0
    %200 = vmatprep.subr.bf16.mxu0 0
    %201 = vmatpush1.bf16.msra.mxu0 0
    %202 = vmatprep.subr.bf16.mxu0 0
    %203 = vmatpush1.bf16.msra.mxu0 0
    %204 = vmatprep.subr.bf16.mxu0 0
    %205 = vmatpush1.bf16.msra.mxu0 0
    %206 = vmatprep.subr.bf16.mxu0 0
    %207 = vmatpush1.bf16.msra.mxu0 0
    %208 = vmatprep.subr.bf16.mxu0 0
    %209 = vmatpush1.bf16.msra.mxu0 0
    %210 = vmatprep.subr.bf16.mxu0 0
    %211 = vmatpush1.bf16.msra.mxu0 0
    %212 = vmatprep.subr.bf16.mxu0 0
    %213 = vmatpush1.bf16.msra.mxu0 0
    %214 = vmatprep.subr.bf16.mxu0 0
    %215 = vmatpush1.bf16.msra.mxu0 0
    %216 = vmatprep.subr.bf16.mxu0 0
    %217 = vmatpush1.bf16.msra.mxu0 0
    %218 = vmatprep.subr.bf16.mxu0 0
    %219 = vmatpush1.bf16.msra.mxu0 0
    %220 = vmatprep.subr.bf16.mxu0 0
    %221 = vmatpush1.bf16.msra.mxu0 0
    %222 = vmatprep.subr.bf16.mxu0 0
    %223 = vmatpush1.bf16.msra.mxu0 0
    %224 = vmatprep.mubr.bf16.mxu0 0
    %225 = vmatmul.mubr.bf16.gmra.mrb[0].mxu0 %v187
    %v226 = vpop.f32.mrb[0].mxu0
    %v227 = vadd.f32 0.0, %v226
    %v228 = vpop.f32.mrb[0].mxu0
    %v229 = vpop.f32.mrb[0].mxu0
    %v230 = vadd.f32 0.0, %v229
    %v231 = vpop.f32.mrb[0].mxu0
    %232 = vmatprep.mubr.bf16.mxu0 0
    %233 = vmatmul.mubr.bf16.gmra.mrb[0].mxu0 %v190
    %v234 = vpop.f32.mrb[0].mxu0
    %v235 = vadd.f32 0.0, %v234
    %v236 = vpop.f32.mrb[0].mxu0
    %v237 = vpop.f32.mrb[0].mxu0
    %v238 = vadd.f32 0.0, %v237
    %v239 = vpop.f32.mrb[0].mxu0
    %240 = vdwg.mxu0
    %v241 = vld [vmem:[%s5] sm:$0xff]
    %v242 = vld [vmem:[%s5 + $0x8] sm:$0xff]
    %v243 = vld [vmem:[%s5 + $0x10] sm:$0xff]
    %v244 = vld [vmem:[%s5 + $0x18] sm:$0xff]
    %v245 = vld [vmem:[%s6] sm:$0x1]
    %v247 = vlaneseq
    %v248 = vshrl.u32 %v247, 7
    %v249 = vsub.s32 0, %v248
    %v250 = vrot.slane %v245, %v249
    %v253 = vsel %vm185, %v227, 0
    %v256 = vsel %vm185, %v230, 0
    %v259 = vsel %vm185, %v235, 0
    %v262 = vsel %vm185, %v238, 0
    %264 = vmatprep.subr.mxu0 0.0
    %265 = vmatpush1.msra.mxu0 %v241
    %266 = vmatprep.subr.mxu0 0.0
    %267 = vmatpush1.msra.mxu0 %v242
    %268 = vmatprep.subr.mxu0 0.0
    %269 = vmatpush1.msra.mxu0 %v243
    %270 = vmatprep.subr.mxu0 0.0
    %271 = vmatpush1.msra.mxu0 %v244
    %272 = vmatprep.subr.mxu0 0.0
    %273 = vmatpush1.msra.mxu0 0.0
    %274 = vmatprep.subr.mxu0 0.0
    %275 = vmatpush1.msra.mxu0 0.0
    %276 = vmatprep.subr.mxu0 0.0
    %277 = vmatpush1.msra.mxu0 0.0
    %278 = vmatprep.subr.mxu0 0.0
    %279 = vmatpush1.msra.mxu0 0.0
    %280 = vmatprep.subr.mxu0 0.0
    %281 = vmatpush1.msra.mxu0 0.0
    %282 = vmatprep.subr.mxu0 0.0
    %283 = vmatpush1.msra.mxu0 0.0
    %284 = vmatprep.subr.mxu0 0.0
    %285 = vmatpush1.msra.mxu0 0.0
    %286 = vmatprep.subr.mxu0 0.0
    %287 = vmatpush1.msra.mxu0 0.0
    %288 = vmatprep.subr.mxu0 0.0
    %289 = vmatpush1.msra.mxu0 0.0
    %290 = vmatprep.subr.mxu0 0.0
    %291 = vmatpush1.msra.mxu0 0.0
    %292 = vmatprep.subr.mxu0 0.0
    %293 = vmatpush1.msra.mxu0 0.0
    %294 = vmatprep.subr.mxu0 0.0
    %295 = vmatpush1.msra.mxu0 0.0
    %296 = vmatprep.subr.mxu0 0.0
    %297 = vmatpush1.msra.mxu0 0.0
    %298 = vmatprep.subr.mxu0 0.0
    %299 = vmatpush1.msra.mxu0 0.0
    %300 = vmatprep.subr.mxu0 0.0
    %301 = vmatpush1.msra.mxu0 0.0
    %302 = vmatprep.subr.mxu0 0.0
    %303 = vmatpush1.msra.mxu0 0.0
    %304 = vmatprep.subr.mxu0 0.0
    %305 = vmatpush1.msra.mxu0 0.0
    %306 = vmatprep.subr.mxu0 0.0
    %307 = vmatpush1.msra.mxu0 0.0
    %308 = vmatprep.subr.mxu0 0.0
    %309 = vmatpush1.msra.mxu0 0.0
    %310 = vmatprep.subr.mxu0 0.0
    %311 = vmatpush1.msra.mxu0 0.0
    %312 = vmatprep.subr.mxu0 0.0
    %313 = vmatpush1.msra.mxu0 0.0
    %314 = vmatprep.subr.mxu0 0.0
    %315 = vmatpush1.msra.mxu0 0.0
    %316 = vmatprep.subr.mxu0 0.0
    %317 = vmatpush1.msra.mxu0 0.0
    %318 = vmatprep.subr.mxu0 0.0
    %319 = vmatpush1.msra.mxu0 0.0
    %320 = vmatprep.subr.mxu0 0.0
    %321 = vmatpush1.msra.mxu0 0.0
    %322 = vmatprep.subr.mxu0 0.0
    %323 = vmatpush1.msra.mxu0 0.0
    %324 = vmatprep.subr.mxu0 0.0
    %325 = vmatpush1.msra.mxu0 0.0
    %326 = vmatprep.subr.mxu0 0.0
    %327 = vmatpush1.msra.mxu0 0.0
    %328 = vmatprep.mubr.f32.mxu0 0.0
    %329 = vmatmul.mubr.f32.gmra.mrb[0].mxu0 %v253
    %v330 = vpop.f32.mrb[0].mxu0
    %v331 = vadd.f32 %v250, %v330
    %v332 = vpop.f32.mrb[0].mxu0
    %333 = vmatprep.mubr.f32.mxu0 0.0
    %334 = vmatmul.mubr.f32.gmra.mrb[0].mxu0 %v256
    %v335 = vpop.f32.mrb[0].mxu0
    %v336 = vadd.f32 %v250, %v335
    %v337 = vpop.f32.mrb[0].mxu0
    %338 = vmatprep.mubr.f32.mxu0 0.0
    %339 = vmatmul.mubr.f32.gmra.mrb[0].mxu0 %v259
    %v340 = vpop.f32.mrb[0].mxu0
    %v341 = vadd.f32 %v250, %v340
    %v342 = vpop.f32.mrb[0].mxu0
    %343 = vmatprep.mubr.f32.mxu0 0.0
    %344 = vmatmul.mubr.f32.gmra.mrb[0].mxu0 %v262
    %v345 = vpop.f32.mrb[0].mxu0
    %v346 = vadd.f32 %v250, %v345
    %v347 = vpop.f32.mrb[0].mxu0
    %348 = vdwg.mxu0
    %v349 = vmax.f32 %v331, 0.0
    %v350 = vmax.f32 %v336, 0.0
    %v351 = vmax.f32 %v341, 0.0
    %v352 = vmax.f32 %v346, 0.0
    %v353 = vadd.f32 %v349, %v148
    %v354 = vadd.f32 %v350, %v153
    %v355 = vadd.f32 %v351, %v158
    %v356 = vadd.f32 %v352, %v163
    %v357 = vld [vmem:[#allocation2] sm:$0xff]
    %v358 = vld [vmem:[#allocation2 + $0x8] sm:$0xff]
    %s359 = scalar_lea.vmem [#allocation2], 16
    %v360 = vld [vmem:[%s359] sm:$0xff]
    %v361 = vld [vmem:[%s359 + $0x8] sm:$0xff]
    %v362 = vmul.f32 %v353, %v353
    %v363 = vmul.f32 %v354, %v354
    %v364 = vmul.f32 %v355, %v355
    %v365 = vmul.f32 %v356, %v356
    %v366 = vsel %vm185, %v362, 0.0
    %367 = vadd.xlane.f32.xlu0 %v366
    %v368 = vpop.xlane.xlu0 %367
    %v369 = vsel %vm185, %v363, 0.0
    %370 = vadd.xlane.f32.xlu0 %v369
    %v371 = vpop.xlane.xlu0 %370
    %v372 = vsel %vm185, %v364, 0.0
    %373 = vadd.xlane.f32.xlu0 %v372
    %v374 = vpop.xlane.xlu0 %373
    %v375 = vsel %vm185, %v365, 0.0
    %376 = vadd.xlane.f32.xlu0 %v375
    %v377 = vpop.xlane.xlu0 %376
    %v378 = vadd.f32 %v368, 1e-12
    %v379 = vadd.f32 %v371, 1e-12
    %v380 = vadd.f32 %v374, 1e-12
    %v381 = vadd.f32 %v377, 1e-12
    %v382 = vrsqrt.pop %v378
    %v383 = vrsqrt.pop %v379
    %v384 = vrsqrt.pop %v380
    %v385 = vrsqrt.pop %v381
    %v386 = vmul.f32 %v353, %v382
    %v387 = vmul.f32 %v354, %v383
    %v388 = vmul.f32 %v355, %v384
    %v389 = vmul.f32 %v356, %v385
    %v391 = vsel %vm185, %v386, 0
    %v394 = vsel %vm185, %v387, 0
    %v397 = vsel %vm185, %v388, 0
    %v400 = vsel %vm185, %v389, 0
    %v403 = vsel %vm185, %v357, 0
    %v406 = vsel %vm185, %v358, 0
    %408 = vmatprep.subr.mxu0 0.0
    %409 = vmatpush1.xpose.msra.mxu0 %v403
    %410 = vmatprep.subr.mxu0 0.0
    %411 = vmatpush1.xpose.msra.mxu0 %v406
    %412 = vmatprep.subr.mxu0 0.0
    %413 = vmatpush1.xpose.msra.mxu0 0.0
    %414 = vmatprep.subr.mxu0 0.0
    %415 = vmatpush1.xpose.msra.mxu0 0.0
    %416 = vmatprep.subr.mxu0 0.0
    %417 = vmatpush1.xpose.msra.mxu0 0.0
    %418 = vmatprep.subr.mxu0 0.0
    %419 = vmatpush1.xpose.msra.mxu0 0.0
    %420 = vmatprep.subr.mxu0 0.0
    %421 = vmatpush1.xpose.msra.mxu0 0.0
    %422 = vmatprep.subr.mxu0 0.0
    %423 = vmatpush1.xpose.msra.mxu0 0.0
    %424 = vmatprep.subr.mxu0 0.0
    %425 = vmatpush1.xpose.msra.mxu0 0.0
    %426 = vmatprep.subr.mxu0 0.0
    %427 = vmatpush1.xpose.msra.mxu0 0.0
    %428 = vmatprep.subr.mxu0 0.0
    %429 = vmatpush1.xpose.msra.mxu0 0.0
    %430 = vmatprep.subr.mxu0 0.0
    %431 = vmatpush1.xpose.msra.mxu0 0.0
    %432 = vmatprep.subr.mxu0 0.0
    %433 = vmatpush1.xpose.msra.mxu0 0.0
    %434 = vmatprep.subr.mxu0 0.0
    %435 = vmatpush1.xpose.msra.mxu0 0.0
    %436 = vmatprep.subr.mxu0 0.0
    %437 = vmatpush1.xpose.msra.mxu0 0.0
    %438 = vmatprep.subr.mxu0 0.0
    %439 = vmatpush1.xpose.msra.mxu0 0.0
    %440 = vmatprep.subr.mxu0 0.0
    %441 = vmatpush1.xpose.msra.mxu0 0.0
    %442 = vmatprep.subr.mxu0 0.0
    %443 = vmatpush1.xpose.msra.mxu0 0.0
    %444 = vmatprep.subr.mxu0 0.0
    %445 = vmatpush1.xpose.msra.mxu0 0.0
    %446 = vmatprep.subr.mxu0 0.0
    %447 = vmatpush1.xpose.msra.mxu0 0.0
    %448 = vmatprep.subr.mxu0 0.0
    %449 = vmatpush1.xpose.msra.mxu0 0.0
    %450 = vmatprep.subr.mxu0 0.0
    %451 = vmatpush1.xpose.msra.mxu0 0.0
    %452 = vmatprep.subr.mxu0 0.0
    %453 = vmatpush1.xpose.msra.mxu0 0.0
    %454 = vmatprep.subr.mxu0 0.0
    %455 = vmatpush1.xpose.msra.mxu0 0.0
    %456 = vmatprep.subr.mxu0 0.0
    %457 = vmatpush1.xpose.msra.mxu0 0.0
    %458 = vmatprep.subr.mxu0 0.0
    %459 = vmatpush1.xpose.msra.mxu0 0.0
    %460 = vmatprep.subr.mxu0 0.0
    %461 = vmatpush1.xpose.msra.mxu0 0.0
    %462 = vmatprep.subr.mxu0 0.0
    %463 = vmatpush1.xpose.msra.mxu0 0.0
    %464 = vmatprep.subr.mxu0 0.0
    %465 = vmatpush1.xpose.msra.mxu0 0.0
    %466 = vmatprep.subr.mxu0 0.0
    %467 = vmatpush1.xpose.msra.mxu0 0.0
    %468 = vmatprep.subr.mxu0 0.0
    %469 = vmatpush1.xpose.msra.mxu0 0.0
    %470 = vmatprep.subr.mxu0 0.0
    %471 = vmatpush1.xpose.msra.mxu0 0.0
    %472 = vmatprep.mubr.f32.mxu0 0.0
    %473 = vmatmul.mubr.f32.gmra.mrb[0].mxu0 %v391
    %v474 = vpop.f32.mrb[0].mxu0
    %v475 = vadd.f32 0.0, %v474
    %v476 = vpop.f32.mrb[0].mxu0
    %477 = vmatprep.mubr.f32.mxu0 0.0
    %478 = vmatmul.mubr.f32.gmra.mrb[0].mxu0 %v394
    %v479 = vpop.f32.mrb[0].mxu0
    %v480 = vadd.f32 0.0, %v479
    %v481 = vpop.f32.mrb[0].mxu0
    %482 = vmatprep.mubr.f32.mxu0 0.0
    %483 = vmatmul.mubr.f32.gmra.mrb[0].mxu0 %v397
    %v484 = vpop.f32.mrb[0].mxu0
    %v485 = vadd.f32 0.0, %v484
    %v486 = vpop.f32.mrb[0].mxu0
    %487 = vmatprep.mubr.f32.mxu0 0.0
    %488 = vmatmul.mubr.f32.gmra.mrb[0].mxu0 %v400
    %v489 = vpop.f32.mrb[0].mxu0
    %v490 = vadd.f32 0.0, %v489
    %v491 = vpop.f32.mrb[0].mxu0
    %492 = vdwg.mxu0
    %vm493 = vcmask 130048
    %v494 = vsel %vm493, %v475, -inf
    %495 = vmax.xlane.f32.xlu0 %v494
    %v496 = vpop.xlane.xlu0 %495
    %v497 = vsel %vm493, %v480, -inf
    %498 = vmax.xlane.f32.xlu0 %v497
    %v499 = vpop.xlane.xlu0 %498
    %v500 = vsel %vm493, %v485, -inf
    %501 = vmax.xlane.f32.xlu0 %v500
    %v502 = vpop.xlane.xlu0 %501
    %v503 = vsel %vm493, %v490, -inf
    %504 = vmax.xlane.f32.xlu0 %v503
    %v505 = vpop.xlane.xlu0 %504
    %vm506 = vcmp.ge.f32.partialorder %v475, %v496
    %vm507 = vcmp.ge.f32.partialorder %v480, %v499
    %vm508 = vcmp.ge.f32.partialorder %v485, %v502
    %vm509 = vcmp.ge.f32.partialorder %v490, %v505
    %v510 = vsel %vm506, %v172, 16
    %v511 = vsel %vm507, %v172, 16
    %v512 = vsel %vm508, %v172, 16
    %v513 = vsel %vm509, %v172, 16
    %v514 = vsel %vm493, %v510, 2147483647
    %v515 = vand.u32 %v514, 65535
    %v516 = vshra.s32 %v514, 16
    %v517 = vcvt.s32.f32 %v515
    %v518 = vcvt.s32.f32 %v516
    %519 = vmin.xlane.f32.xlu0 %v518
    %v520 = vpop.xlane.xlu0 %519
    %vm521 = vcmp.eq.f32.partialorder %v518, %v520
    %v522 = vsel %vm521, %v517, inf
    %523 = vmin.xlane.f32.xlu0 %v522
    %v524 = vpop.xlane.xlu0 %523
    %v525 = vcvt.f32.s32 %v524
    %v526 = vcvt.f32.s32 %v520
    %v527 = vshll.u32 %v526, 16
    %v528 = vadd.s32 %v527, %v525
    %v529 = vsel %vm493, %v511, 2147483647
    %v530 = vand.u32 %v529, 65535
    %v531 = vshra.s32 %v529, 16
    %v532 = vcvt.s32.f32 %v530
    %v533 = vcvt.s32.f32 %v531
    %534 = vmin.xlane.f32.xlu0 %v533
    %v535 = vpop.xlane.xlu0 %534
    %vm536 = vcmp.eq.f32.partialorder %v533, %v535
    %v537 = vsel %vm536, %v532, inf
    %538 = vmin.xlane.f32.xlu0 %v537
    %v539 = vpop.xlane.xlu0 %538
    %v540 = vcvt.f32.s32 %v539
    %v541 = vcvt.f32.s32 %v535
    %v542 = vshll.u32 %v541, 16
    %v543 = vadd.s32 %v542, %v540
    %v544 = vsel %vm493, %v512, 2147483647
    %v545 = vand.u32 %v544, 65535
    %v546 = vshra.s32 %v544, 16
    %v547 = vcvt.s32.f32 %v545
    %v548 = vcvt.s32.f32 %v546
    %549 = vmin.xlane.f32.xlu0 %v548
    %v550 = vpop.xlane.xlu0 %549
    %vm551 = vcmp.eq.f32.partialorder %v548, %v550
    %v552 = vsel %vm551, %v547, inf
    %553 = vmin.xlane.f32.xlu0 %v552
    %v554 = vpop.xlane.xlu0 %553
    %v555 = vcvt.f32.s32 %v554
    %v556 = vcvt.f32.s32 %v550
    %v557 = vshll.u32 %v556, 16
    %v558 = vadd.s32 %v557, %v555
    %v559 = vsel %vm493, %v513, 2147483647
    %v560 = vand.u32 %v559, 65535
    %v561 = vshra.s32 %v559, 16
    %v562 = vcvt.s32.f32 %v560
    %v563 = vcvt.s32.f32 %v561
    %564 = vmin.xlane.f32.xlu0 %v563
    %v565 = vpop.xlane.xlu0 %564
    %vm566 = vcmp.eq.f32.partialorder %v563, %v565
    %v567 = vsel %vm566, %v562, inf
    %568 = vmin.xlane.f32.xlu0 %v567
    %v569 = vpop.xlane.xlu0 %568
    %v570 = vcvt.f32.s32 %v569
    %v571 = vcvt.f32.s32 %v565
    %v572 = vshll.u32 %v571, 16
    %v573 = vadd.s32 %v572, %v570
    %vm574 = vcmp.eq.s32.totalorder %v172, %v528
    %vm575 = vcmp.eq.s32.totalorder %v172, %v543
    %vm576 = vcmp.eq.s32.totalorder %v172, %v558
    %vm577 = vcmp.eq.s32.totalorder %v172, %v573
    %v578 = vsel %vm574, 1, 0
    %v579 = vsel %vm575, 1, 0
    %v580 = vsel %vm576, 1, 0
    %v581 = vsel %vm577, 1, 0
    %v582 = vcvt.s32.f32 %v578
    %v583 = vcvt.s32.f32 %v579
    %v584 = vcvt.s32.f32 %v580
    %v585 = vcvt.s32.f32 %v581
    %v587 = vsel %vm493, %v582, 0
    %v590 = vsel %vm493, %v583, 0
    %v593 = vsel %vm493, %v584, 0
    %v596 = vsel %vm493, %v585, 0
    %598 = vmatprep.subr.mxu0 0.0
    %599 = vmatpush1.msra.mxu0 %v357
    %600 = vmatprep.subr.mxu0 0.0
    %601 = vmatpush1.msra.mxu0 %v358
    %602 = vmatprep.subr.mxu0 0.0
    %603 = vmatpush1.msra.mxu0 0.0
    %604 = vmatprep.subr.mxu0 0.0
    %605 = vmatpush1.msra.mxu0 0.0
    %606 = vmatprep.subr.mxu0 0.0
    %607 = vmatpush1.msra.mxu0 0.0
    %608 = vmatprep.subr.mxu0 0.0
    %609 = vmatpush1.msra.mxu0 0.0
    %610 = vmatprep.subr.mxu0 0.0
    %611 = vmatpush1.msra.mxu0 0.0
    %612 = vmatprep.subr.mxu0 0.0
    %613 = vmatpush1.msra.mxu0 0.0
    %614 = vmatprep.subr.mxu0 0.0
    %615 = vmatpush1.msra.mxu0 0.0
    %616 = vmatprep.subr.mxu0 0.0
    %617 = vmatpush1.msra.mxu0 0.0
    %618 = vmatprep.subr.mxu0 0.0
    %619 = vmatpush1.msra.mxu0 0.0
    %620 = vmatprep.subr.mxu0 0.0
    %621 = vmatpush1.msra.mxu0 0.0
    %622 = vmatprep.subr.mxu0 0.0
    %623 = vmatpush1.msra.mxu0 0.0
    %624 = vmatprep.subr.mxu0 0.0
    %625 = vmatpush1.msra.mxu0 0.0
    %626 = vmatprep.subr.mxu0 0.0
    %627 = vmatpush1.msra.mxu0 0.0
    %628 = vmatprep.subr.mxu0 0.0
    %629 = vmatpush1.msra.mxu0 0.0
    %630 = vmatprep.subr.mxu0 0.0
    %631 = vmatpush1.msra.mxu0 0.0
    %632 = vmatprep.subr.mxu0 0.0
    %633 = vmatpush1.msra.mxu0 0.0
    %634 = vmatprep.subr.mxu0 0.0
    %635 = vmatpush1.msra.mxu0 0.0
    %636 = vmatprep.subr.mxu0 0.0
    %637 = vmatpush1.msra.mxu0 0.0
    %638 = vmatprep.subr.mxu0 0.0
    %639 = vmatpush1.msra.mxu0 0.0
    %640 = vmatprep.subr.mxu0 0.0
    %641 = vmatpush1.msra.mxu0 0.0
    %642 = vmatprep.subr.mxu0 0.0
    %643 = vmatpush1.msra.mxu0 0.0
    %644 = vmatprep.subr.mxu0 0.0
    %645 = vmatpush1.msra.mxu0 0.0
    %646 = vmatprep.subr.mxu0 0.0
    %647 = vmatpush1.msra.mxu0 0.0
    %648 = vmatprep.subr.mxu0 0.0
    %649 = vmatpush1.msra.mxu0 0.0
    %650 = vmatprep.subr.mxu0 0.0
    %651 = vmatpush1.msra.mxu0 0.0
    %652 = vmatprep.subr.mxu0 0.0
    %653 = vmatpush1.msra.mxu0 0.0
    %654 = vmatprep.subr.mxu0 0.0
    %655 = vmatpush1.msra.mxu0 0.0
    %656 = vmatprep.subr.mxu0 0.0
    %657 = vmatpush1.msra.mxu0 0.0
    %658 = vmatprep.subr.mxu0 0.0
    %659 = vmatpush1.msra.mxu0 0.0
    %660 = vmatprep.subr.mxu0 0.0
    %661 = vmatpush1.msra.mxu0 0.0
    %662 = vmatprep.mubr.f32.mxu0 0.0
    %663 = vmatmul.mubr.f32.gmra.mrb[0].mxu0 %v587
    %v664 = vpop.f32.mrb[0].mxu0
    %v665 = vadd.f32 0.0, %v664
    %v666 = vpop.f32.mrb[0].mxu0
    %667 = vmatprep.mubr.f32.mxu0 0.0
    %668 = vmatmul.mubr.f32.gmra.mrb[0].mxu0 %v590
    %v669 = vpop.f32.mrb[0].mxu0
    %v670 = vadd.f32 0.0, %v669
    %v671 = vpop.f32.mrb[0].mxu0
    %672 = vmatprep.mubr.f32.mxu0 0.0
    %673 = vmatmul.mubr.f32.gmra.mrb[0].mxu0 %v593
    %v674 = vpop.f32.mrb[0].mxu0
    %v675 = vadd.f32 0.0, %v674
    %v676 = vpop.f32.mrb[0].mxu0
    %677 = vmatprep.mubr.f32.mxu0 0.0
    %678 = vmatmul.mubr.f32.gmra.mrb[0].mxu0 %v596
    %v679 = vpop.f32.mrb[0].mxu0
    %v680 = vadd.f32 0.0, %v679
    %v681 = vpop.f32.mrb[0].mxu0
    %682 = vdwg.mxu0
    %v683 = vsub.f32 %v386, %v665
    %v684 = vsub.f32 %v387, %v670
    %v685 = vsub.f32 %v388, %v675
    %v686 = vsub.f32 %v389, %v680
    %v687 = vmul.f32 %v683, %v683
    %v688 = vmul.f32 %v684, %v684
    %v689 = vmul.f32 %v685, %v685
    %v690 = vmul.f32 %v686, %v686
    %v691 = vadd.f32 %v687, 0.0
    %v692 = vadd.f32 %v688, 0.0
    %v693 = vadd.f32 %v689, 0.0
    %v694 = vadd.f32 %v690, 0.0
    %v695 = vsel %vm185, %v687, 0.0
    %696 = vadd.xlane.f32.xlu0 %v695
    %v697 = vpop.xlane.xlu0 %696
    %v698 = vsel %vm185, %v688, 0.0
    %699 = vadd.xlane.f32.xlu0 %v698
    %v700 = vpop.xlane.xlu0 %699
    %v701 = vsel %vm185, %v689, 0.0
    %702 = vadd.xlane.f32.xlu0 %v701
    %v703 = vpop.xlane.xlu0 %702
    %v704 = vsel %vm185, %v690, 0.0
    %705 = vadd.xlane.f32.xlu0 %v704
    %v706 = vpop.xlane.xlu0 %705
    %v707 = vadd.f32 %v697, 1e-12
    %v708 = vadd.f32 %v700, 1e-12
    %v709 = vadd.f32 %v703, 1e-12
    %v710 = vadd.f32 %v706, 1e-12
    %v711 = vrsqrt.pop %v707
    %v712 = vrsqrt.pop %v708
    %v713 = vrsqrt.pop %v709
    %v714 = vrsqrt.pop %v710
    %v715 = vmul.f32 %v683, %v711
    %v716 = vmul.f32 %v684, %v712
    %v717 = vmul.f32 %v685, %v713
    %v718 = vmul.f32 %v686, %v714
    %v720 = vsel %vm185, %v715, 0
    %v723 = vsel %vm185, %v716, 0
    %v726 = vsel %vm185, %v717, 0
    %v729 = vsel %vm185, %v718, 0
    %v732 = vsel %vm185, %v360, 0
    %v735 = vsel %vm185, %v361, 0
    %737 = vmatprep.subr.mxu0 0.0
    %738 = vmatpush1.xpose.msra.mxu0 %v732
    %739 = vmatprep.subr.mxu0 0.0
    %740 = vmatpush1.xpose.msra.mxu0 %v735
    %741 = vmatprep.subr.mxu0 0.0
    %742 = vmatpush1.xpose.msra.mxu0 0.0
    %743 = vmatprep.subr.mxu0 0.0
    %744 = vmatpush1.xpose.msra.mxu0 0.0
    %745 = vmatprep.subr.mxu0 0.0
    %746 = vmatpush1.xpose.msra.mxu0 0.0
    %747 = vmatprep.subr.mxu0 0.0
    %748 = vmatpush1.xpose.msra.mxu0 0.0
    %749 = vmatprep.subr.mxu0 0.0
    %750 = vmatpush1.xpose.msra.mxu0 0.0
    %751 = vmatprep.subr.mxu0 0.0
    %752 = vmatpush1.xpose.msra.mxu0 0.0
    %753 = vmatprep.subr.mxu0 0.0
    %754 = vmatpush1.xpose.msra.mxu0 0.0
    %755 = vmatprep.subr.mxu0 0.0
    %756 = vmatpush1.xpose.msra.mxu0 0.0
    %757 = vmatprep.subr.mxu0 0.0
    %758 = vmatpush1.xpose.msra.mxu0 0.0
    %759 = vmatprep.subr.mxu0 0.0
    %760 = vmatpush1.xpose.msra.mxu0 0.0
    %761 = vmatprep.subr.mxu0 0.0
    %762 = vmatpush1.xpose.msra.mxu0 0.0
    %763 = vmatprep.subr.mxu0 0.0
    %764 = vmatpush1.xpose.msra.mxu0 0.0
    %765 = vmatprep.subr.mxu0 0.0
    %766 = vmatpush1.xpose.msra.mxu0 0.0
    %767 = vmatprep.subr.mxu0 0.0
    %768 = vmatpush1.xpose.msra.mxu0 0.0
    %769 = vmatprep.subr.mxu0 0.0
    %770 = vmatpush1.xpose.msra.mxu0 0.0
    %771 = vmatprep.subr.mxu0 0.0
    %772 = vmatpush1.xpose.msra.mxu0 0.0
    %773 = vmatprep.subr.mxu0 0.0
    %774 = vmatpush1.xpose.msra.mxu0 0.0
    %775 = vmatprep.subr.mxu0 0.0
    %776 = vmatpush1.xpose.msra.mxu0 0.0
    %777 = vmatprep.subr.mxu0 0.0
    %778 = vmatpush1.xpose.msra.mxu0 0.0
    %779 = vmatprep.subr.mxu0 0.0
    %780 = vmatpush1.xpose.msra.mxu0 0.0
    %781 = vmatprep.subr.mxu0 0.0
    %782 = vmatpush1.xpose.msra.mxu0 0.0
    %783 = vmatprep.subr.mxu0 0.0
    %784 = vmatpush1.xpose.msra.mxu0 0.0
    %785 = vmatprep.subr.mxu0 0.0
    %786 = vmatpush1.xpose.msra.mxu0 0.0
    %787 = vmatprep.subr.mxu0 0.0
    %788 = vmatpush1.xpose.msra.mxu0 0.0
    %789 = vmatprep.subr.mxu0 0.0
    %790 = vmatpush1.xpose.msra.mxu0 0.0
    %791 = vmatprep.subr.mxu0 0.0
    %792 = vmatpush1.xpose.msra.mxu0 0.0
    %793 = vmatprep.subr.mxu0 0.0
    %794 = vmatpush1.xpose.msra.mxu0 0.0
    %795 = vmatprep.subr.mxu0 0.0
    %796 = vmatpush1.xpose.msra.mxu0 0.0
    %797 = vmatprep.subr.mxu0 0.0
    %798 = vmatpush1.xpose.msra.mxu0 0.0
    %799 = vmatprep.subr.mxu0 0.0
    %800 = vmatpush1.xpose.msra.mxu0 0.0
    %801 = vmatprep.mubr.f32.mxu0 0.0
    %802 = vmatmul.mubr.f32.gmra.mrb[0].mxu0 %v720
    %v803 = vpop.f32.mrb[0].mxu0
    %v804 = vadd.f32 0.0, %v803
    %v805 = vpop.f32.mrb[0].mxu0
    %806 = vmatprep.mubr.f32.mxu0 0.0
    %807 = vmatmul.mubr.f32.gmra.mrb[0].mxu0 %v723
    %v808 = vpop.f32.mrb[0].mxu0
    %v809 = vadd.f32 0.0, %v808
    %v810 = vpop.f32.mrb[0].mxu0
    %811 = vmatprep.mubr.f32.mxu0 0.0
    %812 = vmatmul.mubr.f32.gmra.mrb[0].mxu0 %v726
    %v813 = vpop.f32.mrb[0].mxu0
    %v814 = vadd.f32 0.0, %v813
    %v815 = vpop.f32.mrb[0].mxu0
    %816 = vmatprep.mubr.f32.mxu0 0.0
    %817 = vmatmul.mubr.f32.gmra.mrb[0].mxu0 %v729
    %v818 = vpop.f32.mrb[0].mxu0
    %v819 = vadd.f32 0.0, %v818
    %v820 = vpop.f32.mrb[0].mxu0
    %821 = vdwg.mxu0
    %v822 = vsel %vm493, %v804, -inf
    %823 = vmax.xlane.f32.xlu0 %v822
    %v824 = vpop.xlane.xlu0 %823
    %v825 = vsel %vm493, %v809, -inf
    %826 = vmax.xlane.f32.xlu0 %v825
    %v827 = vpop.xlane.xlu0 %826
    %v828 = vsel %vm493, %v814, -inf
    %829 = vmax.xlane.f32.xlu0 %v828
    %v830 = vpop.xlane.xlu0 %829
    %v831 = vsel %vm493, %v819, -inf
    %832 = vmax.xlane.f32.xlu0 %v831
    %v833 = vpop.xlane.xlu0 %832
    %vm834 = vcmp.ge.f32.partialorder %v804, %v824
    %vm835 = vcmp.ge.f32.partialorder %v809, %v827
    %vm836 = vcmp.ge.f32.partialorder %v814, %v830
    %vm837 = vcmp.ge.f32.partialorder %v819, %v833
    %v838 = vsel %vm834, %v172, 16
    %v839 = vsel %vm835, %v172, 16
    %v840 = vsel %vm836, %v172, 16
    %v841 = vsel %vm837, %v172, 16
    %v842 = vsel %vm493, %v838, 2147483647
    %v843 = vand.u32 %v842, 65535
    %v844 = vshra.s32 %v842, 16
    %v845 = vcvt.s32.f32 %v843
    %v846 = vcvt.s32.f32 %v844
    %847 = vmin.xlane.f32.xlu0 %v846
    %v848 = vpop.xlane.xlu0 %847
    %vm849 = vcmp.eq.f32.partialorder %v846, %v848
    %v850 = vsel %vm849, %v845, inf
    %851 = vmin.xlane.f32.xlu0 %v850
    %v852 = vpop.xlane.xlu0 %851
    %v853 = vcvt.f32.s32 %v852
    %v854 = vcvt.f32.s32 %v848
    %v855 = vshll.u32 %v854, 16
    %v856 = vadd.s32 %v855, %v853
    %v857 = vsel %vm493, %v839, 2147483647
    %v858 = vand.u32 %v857, 65535
    %v859 = vshra.s32 %v857, 16
    %v860 = vcvt.s32.f32 %v858
    %v861 = vcvt.s32.f32 %v859
    %862 = vmin.xlane.f32.xlu0 %v861
    %v863 = vpop.xlane.xlu0 %862
    %vm864 = vcmp.eq.f32.partialorder %v861, %v863
    %v865 = vsel %vm864, %v860, inf
    %866 = vmin.xlane.f32.xlu0 %v865
    %v867 = vpop.xlane.xlu0 %866
    %v868 = vcvt.f32.s32 %v867
    %v869 = vcvt.f32.s32 %v863
    %v870 = vshll.u32 %v869, 16
    %v871 = vadd.s32 %v870, %v868
    %v872 = vsel %vm493, %v840, 2147483647
    %v873 = vand.u32 %v872, 65535
    %v874 = vshra.s32 %v872, 16
    %v875 = vcvt.s32.f32 %v873
    %v876 = vcvt.s32.f32 %v874
    %877 = vmin.xlane.f32.xlu0 %v876
    %v878 = vpop.xlane.xlu0 %877
    %vm879 = vcmp.eq.f32.partialorder %v876, %v878
    %v880 = vsel %vm879, %v875, inf
    %881 = vmin.xlane.f32.xlu0 %v880
    %v882 = vpop.xlane.xlu0 %881
    %v883 = vcvt.f32.s32 %v882
    %v884 = vcvt.f32.s32 %v878
    %v885 = vshll.u32 %v884, 16
    %v886 = vadd.s32 %v885, %v883
    %v887 = vsel %vm493, %v841, 2147483647
    %v888 = vand.u32 %v887, 65535
    %v889 = vshra.s32 %v887, 16
    %v890 = vcvt.s32.f32 %v888
    %v891 = vcvt.s32.f32 %v889
    %892 = vmin.xlane.f32.xlu0 %v891
    %v893 = vpop.xlane.xlu0 %892
    %vm894 = vcmp.eq.f32.partialorder %v891, %v893
    %v895 = vsel %vm894, %v890, inf
    %896 = vmin.xlane.f32.xlu0 %v895
    %v897 = vpop.xlane.xlu0 %896
    %v898 = vcvt.f32.s32 %v897
    %v899 = vcvt.f32.s32 %v893
    %v900 = vshll.u32 %v899, 16
    %v901 = vadd.s32 %v900, %v898
    %vm902 = vcmp.eq.s32.totalorder %v172, %v856
    %vm903 = vcmp.eq.s32.totalorder %v172, %v871
    %vm904 = vcmp.eq.s32.totalorder %v172, %v886
    %vm905 = vcmp.eq.s32.totalorder %v172, %v901
    %v906 = vsel %vm902, 1, 0
    %v907 = vsel %vm903, 1, 0
    %v908 = vsel %vm904, 1, 0
    %v909 = vsel %vm905, 1, 0
    %v910 = vcvt.s32.f32 %v906
    %v911 = vcvt.s32.f32 %v907
    %v912 = vcvt.s32.f32 %v908
    %v913 = vcvt.s32.f32 %v909
    %v915 = vsel %vm493, %v910, 0
    %v918 = vsel %vm493, %v911, 0
    %v921 = vsel %vm493, %v912, 0
    %v924 = vsel %vm493, %v913, 0
    %926 = vmatprep.subr.mxu0 0.0
    %927 = vmatpush1.msra.mxu0 %v360
    %928 = vmatprep.subr.mxu0 0.0
    %929 = vmatpush1.msra.mxu0 %v361
    %930 = vmatprep.subr.mxu0 0.0
    %931 = vmatpush1.msra.mxu0 0.0
    %932 = vmatprep.subr.mxu0 0.0
    %933 = vmatpush1.msra.mxu0 0.0
    %934 = vmatprep.subr.mxu0 0.0
    %935 = vmatpush1.msra.mxu0 0.0
    %936 = vmatprep.subr.mxu0 0.0
    %937 = vmatpush1.msra.mxu0 0.0
    %938 = vmatprep.subr.mxu0 0.0
    %939 = vmatpush1.msra.mxu0 0.0
    %940 = vmatprep.subr.mxu0 0.0
    %941 = vmatpush1.msra.mxu0 0.0
    %942 = vmatprep.subr.mxu0 0.0
    %943 = vmatpush1.msra.mxu0 0.0
    %944 = vmatprep.subr.mxu0 0.0
    %945 = vmatpush1.msra.mxu0 0.0
    %946 = vmatprep.subr.mxu0 0.0
    %947 = vmatpush1.msra.mxu0 0.0
    %948 = vmatprep.subr.mxu0 0.0
    %949 = vmatpush1.msra.mxu0 0.0
    %950 = vmatprep.subr.mxu0 0.0
    %951 = vmatpush1.msra.mxu0 0.0
    %952 = vmatprep.subr.mxu0 0.0
    %953 = vmatpush1.msra.mxu0 0.0
    %954 = vmatprep.subr.mxu0 0.0
    %955 = vmatpush1.msra.mxu0 0.0
    %956 = vmatprep.subr.mxu0 0.0
    %957 = vmatpush1.msra.mxu0 0.0
    %958 = vmatprep.subr.mxu0 0.0
    %959 = vmatpush1.msra.mxu0 0.0
    %960 = vmatprep.subr.mxu0 0.0
    %961 = vmatpush1.msra.mxu0 0.0
    %962 = vmatprep.subr.mxu0 0.0
    %963 = vmatpush1.msra.mxu0 0.0
    %964 = vmatprep.subr.mxu0 0.0
    %965 = vmatpush1.msra.mxu0 0.0
    %966 = vmatprep.subr.mxu0 0.0
    %967 = vmatpush1.msra.mxu0 0.0
    %968 = vmatprep.subr.mxu0 0.0
    %969 = vmatpush1.msra.mxu0 0.0
    %970 = vmatprep.subr.mxu0 0.0
    %971 = vmatpush1.msra.mxu0 0.0
    %972 = vmatprep.subr.mxu0 0.0
    %973 = vmatpush1.msra.mxu0 0.0
    %974 = vmatprep.subr.mxu0 0.0
    %975 = vmatpush1.msra.mxu0 0.0
    %976 = vmatprep.subr.mxu0 0.0
    %977 = vmatpush1.msra.mxu0 0.0
    %978 = vmatprep.subr.mxu0 0.0
    %979 = vmatpush1.msra.mxu0 0.0
    %980 = vmatprep.subr.mxu0 0.0
    %981 = vmatpush1.msra.mxu0 0.0
    %982 = vmatprep.subr.mxu0 0.0
    %983 = vmatpush1.msra.mxu0 0.0
    %984 = vmatprep.subr.mxu0 0.0
    %985 = vmatpush1.msra.mxu0 0.0
    %986 = vmatprep.subr.mxu0 0.0
    %987 = vmatpush1.msra.mxu0 0.0
    %988 = vmatprep.subr.mxu0 0.0
    %989 = vmatpush1.msra.mxu0 0.0
    %990 = vmatprep.mubr.f32.mxu0 0.0
    %991 = vmatmul.mubr.f32.gmra.mrb[0].mxu0 %v915
    %v992 = vpop.f32.mrb[0].mxu0
    %v993 = vadd.f32 0.0, %v992
    %v994 = vpop.f32.mrb[0].mxu0
    %995 = vmatprep.mubr.f32.mxu0 0.0
    %996 = vmatmul.mubr.f32.gmra.mrb[0].mxu0 %v918
    %v997 = vpop.f32.mrb[0].mxu0
    %v998 = vadd.f32 0.0, %v997
    %v999 = vpop.f32.mrb[0].mxu0
    %1000 = vmatprep.mubr.f32.mxu0 0.0
    %1001 = vmatmul.mubr.f32.gmra.mrb[0].mxu0 %v921
    %v1002 = vpop.f32.mrb[0].mxu0
    %v1003 = vadd.f32 0.0, %v1002
    %v1004 = vpop.f32.mrb[0].mxu0
    %1005 = vmatprep.mubr.f32.mxu0 0.0
    %1006 = vmatmul.mubr.f32.gmra.mrb[0].mxu0 %v924
    %v1007 = vpop.f32.mrb[0].mxu0
    %v1008 = vadd.f32 0.0, %v1007
    %v1009 = vpop.f32.mrb[0].mxu0
    %1010 = vdwg.mxu0
    %v1011 = vsub.f32 %v715, %v993
    %v1012 = vsub.f32 %v716, %v998
    %v1013 = vsub.f32 %v717, %v1003
    %v1014 = vsub.f32 %v718, %v1008
    %v1015 = vmul.f32 %v1011, %v1011
    %v1016 = vmul.f32 %v1012, %v1012
    %v1017 = vmul.f32 %v1013, %v1013
    %v1018 = vmul.f32 %v1014, %v1014
    %v1019 = vadd.f32 %v691, %v1015
    %v1020 = vadd.f32 %v692, %v1016
    %v1021 = vadd.f32 %v693, %v1017
    %v1022 = vadd.f32 %v694, %v1018
    %v1023 = vcvt.s32.f32 %v528
    %v1024 = vcvt.s32.f32 %v543
    %v1025 = vcvt.s32.f32 %v558
    %v1026 = vcvt.s32.f32 %v573
    %v1028 = vsel %vm185, %v170, 0
    %1030 = vmatprep.subr.mxu0 0.0
    %1031 = vmatpush1.msra.mxu0 %v1023
    %1032 = vmatprep.subr.mxu0 0.0
    %1033 = vmatpush1.msra.mxu0 %v1024
    %1034 = vmatprep.subr.mxu0 0.0
    %1035 = vmatpush1.msra.mxu0 %v1025
    %1036 = vmatprep.subr.mxu0 0.0
    %1037 = vmatpush1.msra.mxu0 %v1026
    %1038 = vmatprep.subr.mxu0 0.0
    %1039 = vmatpush1.msra.mxu0 0.0
    %1040 = vmatprep.subr.mxu0 0.0
    %1041 = vmatpush1.msra.mxu0 0.0
    %1042 = vmatprep.subr.mxu0 0.0
    %1043 = vmatpush1.msra.mxu0 0.0
    %1044 = vmatprep.subr.mxu0 0.0
    %1045 = vmatpush1.msra.mxu0 0.0
    %1046 = vmatprep.subr.mxu0 0.0
    %1047 = vmatpush1.msra.mxu0 0.0
    %1048 = vmatprep.subr.mxu0 0.0
    %1049 = vmatpush1.msra.mxu0 0.0
    %1050 = vmatprep.subr.mxu0 0.0
    %1051 = vmatpush1.msra.mxu0 0.0
    %1052 = vmatprep.subr.mxu0 0.0
    %1053 = vmatpush1.msra.mxu0 0.0
    %1054 = vmatprep.subr.mxu0 0.0
    %1055 = vmatpush1.msra.mxu0 0.0
    %1056 = vmatprep.subr.mxu0 0.0
    %1057 = vmatpush1.msra.mxu0 0.0
    %1058 = vmatprep.subr.mxu0 0.0
    %1059 = vmatpush1.msra.mxu0 0.0
    %1060 = vmatprep.subr.mxu0 0.0
    %1061 = vmatpush1.msra.mxu0 0.0
    %1062 = vmatprep.subr.mxu0 0.0
    %1063 = vmatpush1.msra.mxu0 0.0
    %1064 = vmatprep.subr.mxu0 0.0
    %1065 = vmatpush1.msra.mxu0 0.0
    %1066 = vmatprep.subr.mxu0 0.0
    %1067 = vmatpush1.msra.mxu0 0.0
    %1068 = vmatprep.subr.mxu0 0.0
    %1069 = vmatpush1.msra.mxu0 0.0
    %1070 = vmatprep.subr.mxu0 0.0
    %1071 = vmatpush1.msra.mxu0 0.0
    %1072 = vmatprep.subr.mxu0 0.0
    %1073 = vmatpush1.msra.mxu0 0.0
    %1074 = vmatprep.subr.mxu0 0.0
    %1075 = vmatpush1.msra.mxu0 0.0
    %1076 = vmatprep.subr.mxu0 0.0
    %1077 = vmatpush1.msra.mxu0 0.0
    %1078 = vmatprep.subr.mxu0 0.0
    %1079 = vmatpush1.msra.mxu0 0.0
    %1080 = vmatprep.subr.mxu0 0.0
    %1081 = vmatpush1.msra.mxu0 0.0
    %1082 = vmatprep.subr.mxu0 0.0
    %1083 = vmatpush1.msra.mxu0 0.0
    %1084 = vmatprep.subr.mxu0 0.0
    %1085 = vmatpush1.msra.mxu0 0.0
    %1086 = vmatprep.subr.mxu0 0.0
    %1087 = vmatpush1.msra.mxu0 0.0
    %1088 = vmatprep.subr.mxu0 0.0
    %1089 = vmatpush1.msra.mxu0 0.0
    %1090 = vmatprep.subr.mxu0 0.0
    %1091 = vmatpush1.msra.mxu0 0.0
    %1092 = vmatprep.subr.mxu0 0.0
    %1093 = vmatpush1.msra.mxu0 0.0
    %1094 = vmatprep.mubr.f32.mxu0 0.0
    %1095 = vmatmul.mubr.f32.gmra.mrb[0].mxu0 %v1028
    %v1096 = vpop.f32.mrb[0].mxu0
    %v1097 = vadd.f32 0.0, %v1096
    %v1098 = vpop.f32.mrb[0].mxu0
    %1099 = vdwg.mxu0
    %v1100 = vcvt.f32.s32.to.zero.pseudo %v1097
    %vm1101 = vcmask 1024
    %1102 = vst.msk [vmem:[#allocation7] sm:$0x3] %vm1101, %v1100
    %v1103 = vcvt.s32.f32 %v856
    %v1104 = vcvt.s32.f32 %v871
    %v1105 = vcvt.s32.f32 %v886
    %v1106 = vcvt.s32.f32 %v901
    %1107 = vmatprep.subr.mxu0 0.0
    %1108 = vmatpush1.msra.mxu0 %v1103
    %1109 = vmatprep.subr.mxu0 0.0
    %1110 = vmatpush1.msra.mxu0 %v1104
    %1111 = vmatprep.subr.mxu0 0.0
    %1112 = vmatpush1.msra.mxu0 %v1105
    %1113 = vmatprep.subr.mxu0 0.0
    %1114 = vmatpush1.msra.mxu0 %v1106
    %1115 = vmatprep.subr.mxu0 0.0
    %1116 = vmatpush1.msra.mxu0 0.0
    %1117 = vmatprep.subr.mxu0 0.0
    %1118 = vmatpush1.msra.mxu0 0.0
    %1119 = vmatprep.subr.mxu0 0.0
    %1120 = vmatpush1.msra.mxu0 0.0
    %1121 = vmatprep.subr.mxu0 0.0
    %1122 = vmatpush1.msra.mxu0 0.0
    %1123 = vmatprep.subr.mxu0 0.0
    %1124 = vmatpush1.msra.mxu0 0.0
    %1125 = vmatprep.subr.mxu0 0.0
    %1126 = vmatpush1.msra.mxu0 0.0
    %1127 = vmatprep.subr.mxu0 0.0
    %1128 = vmatpush1.msra.mxu0 0.0
    %1129 = vmatprep.subr.mxu0 0.0
    %1130 = vmatpush1.msra.mxu0 0.0
    %1131 = vmatprep.subr.mxu0 0.0
    %1132 = vmatpush1.msra.mxu0 0.0
    %1133 = vmatprep.subr.mxu0 0.0
    %1134 = vmatpush1.msra.mxu0 0.0
    %1135 = vmatprep.subr.mxu0 0.0
    %1136 = vmatpush1.msra.mxu0 0.0
    %1137 = vmatprep.subr.mxu0 0.0
    %1138 = vmatpush1.msra.mxu0 0.0
    %1139 = vmatprep.subr.mxu0 0.0
    %1140 = vmatpush1.msra.mxu0 0.0
    %1141 = vmatprep.subr.mxu0 0.0
    %1142 = vmatpush1.msra.mxu0 0.0
    %1143 = vmatprep.subr.mxu0 0.0
    %1144 = vmatpush1.msra.mxu0 0.0
    %1145 = vmatprep.subr.mxu0 0.0
    %1146 = vmatpush1.msra.mxu0 0.0
    %1147 = vmatprep.subr.mxu0 0.0
    %1148 = vmatpush1.msra.mxu0 0.0
    %1149 = vmatprep.subr.mxu0 0.0
    %1150 = vmatpush1.msra.mxu0 0.0
    %1151 = vmatprep.subr.mxu0 0.0
    %1152 = vmatpush1.msra.mxu0 0.0
    %1153 = vmatprep.subr.mxu0 0.0
    %1154 = vmatpush1.msra.mxu0 0.0
    %1155 = vmatprep.subr.mxu0 0.0
    %1156 = vmatpush1.msra.mxu0 0.0
    %1157 = vmatprep.subr.mxu0 0.0
    %1158 = vmatpush1.msra.mxu0 0.0
    %1159 = vmatprep.subr.mxu0 0.0
    %1160 = vmatpush1.msra.mxu0 0.0
    %1161 = vmatprep.subr.mxu0 0.0
    %1162 = vmatpush1.msra.mxu0 0.0
    %1163 = vmatprep.subr.mxu0 0.0
    %1164 = vmatpush1.msra.mxu0 0.0
    %1165 = vmatprep.subr.mxu0 0.0
    %1166 = vmatpush1.msra.mxu0 0.0
    %1167 = vmatprep.subr.mxu0 0.0
    %1168 = vmatpush1.msra.mxu0 0.0
    %1169 = vmatprep.subr.mxu0 0.0
    %1170 = vmatpush1.msra.mxu0 0.0
    %1171 = vmatprep.mubr.f32.mxu0 0.0
    %1172 = vmatmul.mubr.f32.gmra.mrb[0].mxu0 %v1028
    %v1173 = vpop.f32.mrb[0].mxu0
    %v1174 = vadd.f32 0.0, %v1173
    %v1175 = vpop.f32.mrb[0].mxu0
    %1176 = vdwg.mxu0
    %v1177 = vcvt.f32.s32.to.zero.pseudo %v1174
    %1178 = vrot.lane.b32.xlu0 %v1177, 1
    %v1179 = vpop.permute.xlu0 %1178
    %vm1180 = vcmask 9224
    %1181 = vst.msk [vmem:[#allocation7] sm:$0x3] %vm1180, %v1179
    %v1182 = vpack.c.bf16 %v354, %v353
    %v1183 = vpack.c.bf16 %v356, %v355
    %1184 = vmatprep.subr.bf16.mxu0 0
    %1185 = vmatpush1.bf16.msra.mxu0 %v1182
    %1186 = vmatprep.subr.bf16.mxu0 0
    %1187 = vmatpush1.bf16.msra.mxu0 %v1183
    %1188 = vmatprep.subr.bf16.mxu0 0
    %1189 = vmatpush1.bf16.msra.mxu0 0
    %1190 = vmatprep.subr.bf16.mxu0 0
    %1191 = vmatpush1.bf16.msra.mxu0 0
    %1192 = vmatprep.subr.bf16.mxu0 0
    %1193 = vmatpush1.bf16.msra.mxu0 0
    %1194 = vmatprep.subr.bf16.mxu0 0
    %1195 = vmatpush1.bf16.msra.mxu0 0
    %1196 = vmatprep.subr.bf16.mxu0 0
    %1197 = vmatpush1.bf16.msra.mxu0 0
    %1198 = vmatprep.subr.bf16.mxu0 0
    %1199 = vmatpush1.bf16.msra.mxu0 0
    %1200 = vmatprep.subr.bf16.mxu0 0
    %1201 = vmatpush1.bf16.msra.mxu0 0
    %1202 = vmatprep.subr.bf16.mxu0 0
    %1203 = vmatpush1.bf16.msra.mxu0 0
    %1204 = vmatprep.subr.bf16.mxu0 0
    %1205 = vmatpush1.bf16.msra.mxu0 0
    %1206 = vmatprep.subr.bf16.mxu0 0
    %1207 = vmatpush1.bf16.msra.mxu0 0
    %1208 = vmatprep.subr.bf16.mxu0 0
    %1209 = vmatpush1.bf16.msra.mxu0 0
    %1210 = vmatprep.subr.bf16.mxu0 0
    %1211 = vmatpush1.bf16.msra.mxu0 0
    %1212 = vmatprep.subr.bf16.mxu0 0
    %1213 = vmatpush1.bf16.msra.mxu0 0
    %1214 = vmatprep.subr.bf16.mxu0 0
    %1215 = vmatpush1.bf16.msra.mxu0 0
    %1216 = vmatprep.mubr.bf16.mxu0 0
    %1217 = vmatmul.mubr.bf16.gmra.mrb[0].mxu0 %v187
    %v1218 = vpop.f32.mrb[0].mxu0
    %v1219 = vadd.f32 0.0, %v1218
    %v1220 = vpop.f32.mrb[0].mxu0
    %v1221 = vpop.f32.mrb[0].mxu0
    %v1222 = vadd.f32 0.0, %v1221
    %v1223 = vpop.f32.mrb[0].mxu0
    %1224 = vmatprep.mubr.bf16.mxu0 0
    %1225 = vmatmul.mubr.bf16.gmra.mrb[0].mxu0 %v190
    %v1226 = vpop.f32.mrb[0].mxu0
    %v1227 = vadd.f32 0.0, %v1226
    %v1228 = vpop.f32.mrb[0].mxu0
    %v1229 = vpop.f32.mrb[0].mxu0
    %v1230 = vadd.f32 0.0, %v1229
    %v1231 = vpop.f32.mrb[0].mxu0
    %1232 = vdwg.mxu0
    %s1233 = scalar_lea.vmem %s5, 32
    %v1234 = vld [vmem:[%s1233] sm:$0xff]
    %v1235 = vld [vmem:[%s1233 + $0x8] sm:$0xff]
    %v1236 = vld [vmem:[%s1233 + $0x10] sm:$0xff]
    %v1237 = vld [vmem:[%s1233 + $0x18] sm:$0xff]
    %s1238 = scalar_lea.vmem %s6, 1
    %v1239 = vld [vmem:[%s1238] sm:$0x1]
    %v1241 = vlaneseq
    %v1242 = vshrl.u32 %v1241, 7
    %v1243 = vsub.s32 0, %v1242
    %v1244 = vrot.slane %v1239, %v1243
    %v1247 = vsel %vm185, %v1219, 0
    %v1250 = vsel %vm185, %v1222, 0
    %v1253 = vsel %vm185, %v1227, 0
    %v1256 = vsel %vm185, %v1230, 0
    %1258 = vmatprep.subr.mxu0 0.0
    %1259 = vmatpush1.msra.mxu0 %v1234
    %1260 = vmatprep.subr.mxu0 0.0
    %1261 = vmatpush1.msra.mxu0 %v1235
    %1262 = vmatprep.subr.mxu0 0.0
    %1263 = vmatpush1.msra.mxu0 %v1236
    %1264 = vmatprep.subr.mxu0 0.0
    %1265 = vmatpush1.msra.mxu0 %v1237
    %1266 = vmatprep.subr.mxu0 0.0
    %1267 = vmatpush1.msra.mxu0 0.0
    %1268 = vmatprep.subr.mxu0 0.0
    %1269 = vmatpush1.msra.mxu0 0.0
    %1270 = vmatprep.subr.mxu0 0.0
    %1271 = vmatpush1.msra.mxu0 0.0
    %1272 = vmatprep.subr.mxu0 0.0
    %1273 = vmatpush1.msra.mxu0 0.0
    %1274 = vmatprep.subr.mxu0 0.0
    %1275 = vmatpush1.msra.mxu0 0.0
    %1276 = vmatprep.subr.mxu0 0.0
    %1277 = vmatpush1.msra.mxu0 0.0
    %1278 = vmatprep.subr.mxu0 0.0
    %1279 = vmatpush1.msra.mxu0 0.0
    %1280 = vmatprep.subr.mxu0 0.0
    %1281 = vmatpush1.msra.mxu0 0.0
    %1282 = vmatprep.subr.mxu0 0.0
    %1283 = vmatpush1.msra.mxu0 0.0
    %1284 = vmatprep.subr.mxu0 0.0
    %1285 = vmatpush1.msra.mxu0 0.0
    %1286 = vmatprep.subr.mxu0 0.0
    %1287 = vmatpush1.msra.mxu0 0.0
    %1288 = vmatprep.subr.mxu0 0.0
    %1289 = vmatpush1.msra.mxu0 0.0
    %1290 = vmatprep.subr.mxu0 0.0
    %1291 = vmatpush1.msra.mxu0 0.0
    %1292 = vmatprep.subr.mxu0 0.0
    %1293 = vmatpush1.msra.mxu0 0.0
    %1294 = vmatprep.subr.mxu0 0.0
    %1295 = vmatpush1.msra.mxu0 0.0
    %1296 = vmatprep.subr.mxu0 0.0
    %1297 = vmatpush1.msra.mxu0 0.0
    %1298 = vmatprep.subr.mxu0 0.0
    %1299 = vmatpush1.msra.mxu0 0.0
    %1300 = vmatprep.subr.mxu0 0.0
    %1301 = vmatpush1.msra.mxu0 0.0
    %1302 = vmatprep.subr.mxu0 0.0
    %1303 = vmatpush1.msra.mxu0 0.0
    %1304 = vmatprep.subr.mxu0 0.0
    %1305 = vmatpush1.msra.mxu0 0.0
    %1306 = vmatprep.subr.mxu0 0.0
    %1307 = vmatpush1.msra.mxu0 0.0
    %1308 = vmatprep.subr.mxu0 0.0
    %1309 = vmatpush1.msra.mxu0 0.0
    %1310 = vmatprep.subr.mxu0 0.0
    %1311 = vmatpush1.msra.mxu0 0.0
    %1312 = vmatprep.subr.mxu0 0.0
    %1313 = vmatpush1.msra.mxu0 0.0
    %1314 = vmatprep.subr.mxu0 0.0
    %1315 = vmatpush1.msra.mxu0 0.0
    %1316 = vmatprep.subr.mxu0 0.0
    %1317 = vmatpush1.msra.mxu0 0.0
    %1318 = vmatprep.subr.mxu0 0.0
    %1319 = vmatpush1.msra.mxu0 0.0
    %1320 = vmatprep.subr.mxu0 0.0
    %1321 = vmatpush1.msra.mxu0 0.0
    %1322 = vmatprep.mubr.f32.mxu0 0.0
    %1323 = vmatmul.mubr.f32.gmra.mrb[0].mxu0 %v1247
    %v1324 = vpop.f32.mrb[0].mxu0
    %v1325 = vadd.f32 %v1244, %v1324
    %v1326 = vpop.f32.mrb[0].mxu0
    %1327 = vmatprep.mubr.f32.mxu0 0.0
    %1328 = vmatmul.mubr.f32.gmra.mrb[0].mxu0 %v1250
    %v1329 = vpop.f32.mrb[0].mxu0
    %v1330 = vadd.f32 %v1244, %v1329
    %v1331 = vpop.f32.mrb[0].mxu0
    %1332 = vmatprep.mubr.f32.mxu0 0.0
    %1333 = vmatmul.mubr.f32.gmra.mrb[0].mxu0 %v1253
    %v1334 = vpop.f32.mrb[0].mxu0
    %v1335 = vadd.f32 %v1244, %v1334
    %v1336 = vpop.f32.mrb[0].mxu0
    %1337 = vmatprep.mubr.f32.mxu0 0.0
    %1338 = vmatmul.mubr.f32.gmra.mrb[0].mxu0 %v1256
    %v1339 = vpop.f32.mrb[0].mxu0
    %v1340 = vadd.f32 %v1244, %v1339
    %v1341 = vpop.f32.mrb[0].mxu0
    %1342 = vdwg.mxu0
    %v1343 = vmax.f32 %v1325, 0.0
    %v1344 = vmax.f32 %v1330, 0.0
    %v1345 = vmax.f32 %v1335, 0.0
    %v1346 = vmax.f32 %v1340, 0.0
    %v1347 = vadd.f32 %v1343, %v353
    %v1348 = vadd.f32 %v1344, %v354
    %v1349 = vadd.f32 %v1345, %v355
    %v1350 = vadd.f32 %v1346, %v356
    %s1351 = scalar_lea.vmem [#allocation2], 32
    %v1352 = vld [vmem:[%s1351] sm:$0xff]
    %v1353 = vld [vmem:[%s1351 + $0x8] sm:$0xff]
    %s1354 = scalar_lea.vmem [#allocation2], 48
    %v1355 = vld [vmem:[%s1354] sm:$0xff]
    %v1356 = vld [vmem:[%s1354 + $0x8] sm:$0xff]
    %v1357 = vmul.f32 %v1347, %v1347
    %v1358 = vmul.f32 %v1348, %v1348
    %v1359 = vmul.f32 %v1349, %v1349
    %v1360 = vmul.f32 %v1350, %v1350
    %v1361 = vsel %vm185, %v1357, 0.0
    %1362 = vadd.xlane.f32.xlu0 %v1361
    %v1363 = vpop.xlane.xlu0 %1362
    %v1364 = vsel %vm185, %v1358, 0.0
    %1365 = vadd.xlane.f32.xlu0 %v1364
    %v1366 = vpop.xlane.xlu0 %1365
    %v1367 = vsel %vm185, %v1359, 0.0
    %1368 = vadd.xlane.f32.xlu0 %v1367
    %v1369 = vpop.xlane.xlu0 %1368
    %v1370 = vsel %vm185, %v1360, 0.0
    %1371 = vadd.xlane.f32.xlu0 %v1370
    %v1372 = vpop.xlane.xlu0 %1371
    %v1373 = vadd.f32 %v1363, 1e-12
    %v1374 = vadd.f32 %v1366, 1e-12
    %v1375 = vadd.f32 %v1369, 1e-12
    %v1376 = vadd.f32 %v1372, 1e-12
    %v1377 = vrsqrt.pop %v1373
    %v1378 = vrsqrt.pop %v1374
    %v1379 = vrsqrt.pop %v1375
    %v1380 = vrsqrt.pop %v1376
    %v1381 = vmul.f32 %v1347, %v1377
    %v1382 = vmul.f32 %v1348, %v1378
    %v1383 = vmul.f32 %v1349, %v1379
    %v1384 = vmul.f32 %v1350, %v1380
    %v1386 = vsel %vm185, %v1381, 0
    %v1389 = vsel %vm185, %v1382, 0
    %v1392 = vsel %vm185, %v1383, 0
    %v1395 = vsel %vm185, %v1384, 0
    %v1398 = vsel %vm185, %v1352, 0
    %v1401 = vsel %vm185, %v1353, 0
    %1403 = vmatprep.subr.mxu0 0.0
    %1404 = vmatpush1.xpose.msra.mxu0 %v1398
    %1405 = vmatprep.subr.mxu0 0.0
    %1406 = vmatpush1.xpose.msra.mxu0 %v1401
    %1407 = vmatprep.subr.mxu0 0.0
    %1408 = vmatpush1.xpose.msra.mxu0 0.0
    %1409 = vmatprep.subr.mxu0 0.0
    %1410 = vmatpush1.xpose.msra.mxu0 0.0
    %1411 = vmatprep.subr.mxu0 0.0
    %1412 = vmatpush1.xpose.msra.mxu0 0.0
    %1413 = vmatprep.subr.mxu0 0.0
    %1414 = vmatpush1.xpose.msra.mxu0 0.0
    %1415 = vmatprep.subr.mxu0 0.0
    %1416 = vmatpush1.xpose.msra.mxu0 0.0
    %1417 = vmatprep.subr.mxu0 0.0
    %1418 = vmatpush1.xpose.msra.mxu0 0.0
    %1419 = vmatprep.subr.mxu0 0.0
    %1420 = vmatpush1.xpose.msra.mxu0 0.0
    %1421 = vmatprep.subr.mxu0 0.0
    %1422 = vmatpush1.xpose.msra.mxu0 0.0
    %1423 = vmatprep.subr.mxu0 0.0
    %1424 = vmatpush1.xpose.msra.mxu0 0.0
    %1425 = vmatprep.subr.mxu0 0.0
    %1426 = vmatpush1.xpose.msra.mxu0 0.0
    %1427 = vmatprep.subr.mxu0 0.0
    %1428 = vmatpush1.xpose.msra.mxu0 0.0
    %1429 = vmatprep.subr.mxu0 0.0
    %1430 = vmatpush1.xpose.msra.mxu0 0.0
    %1431 = vmatprep.subr.mxu0 0.0
    %1432 = vmatpush1.xpose.msra.mxu0 0.0
    %1433 = vmatprep.subr.mxu0 0.0
    %1434 = vmatpush1.xpose.msra.mxu0 0.0
    %1435 = vmatprep.subr.mxu0 0.0
    %1436 = vmatpush1.xpose.msra.mxu0 0.0
    %1437 = vmatprep.subr.mxu0 0.0
    %1438 = vmatpush1.xpose.msra.mxu0 0.0
    %1439 = vmatprep.subr.mxu0 0.0
    %1440 = vmatpush1.xpose.msra.mxu0 0.0
    %1441 = vmatprep.subr.mxu0 0.0
    %1442 = vmatpush1.xpose.msra.mxu0 0.0
    %1443 = vmatprep.subr.mxu0 0.0
    %1444 = vmatpush1.xpose.msra.mxu0 0.0
    %1445 = vmatprep.subr.mxu0 0.0
    %1446 = vmatpush1.xpose.msra.mxu0 0.0
    %1447 = vmatprep.subr.mxu0 0.0
    %1448 = vmatpush1.xpose.msra.mxu0 0.0
    %1449 = vmatprep.subr.mxu0 0.0
    %1450 = vmatpush1.xpose.msra.mxu0 0.0
    %1451 = vmatprep.subr.mxu0 0.0
    %1452 = vmatpush1.xpose.msra.mxu0 0.0
    %1453 = vmatprep.subr.mxu0 0.0
    %1454 = vmatpush1.xpose.msra.mxu0 0.0
    %1455 = vmatprep.subr.mxu0 0.0
    %1456 = vmatpush1.xpose.msra.mxu0 0.0
    %1457 = vmatprep.subr.mxu0 0.0
    %1458 = vmatpush1.xpose.msra.mxu0 0.0
    %1459 = vmatprep.subr.mxu0 0.0
    %1460 = vmatpush1.xpose.msra.mxu0 0.0
    %1461 = vmatprep.subr.mxu0 0.0
    %1462 = vmatpush1.xpose.msra.mxu0 0.0
    %1463 = vmatprep.subr.mxu0 0.0
    %1464 = vmatpush1.xpose.msra.mxu0 0.0
    %1465 = vmatprep.subr.mxu0 0.0
    %1466 = vmatpush1.xpose.msra.mxu0 0.0
    %1467 = vmatprep.mubr.f32.mxu0 0.0
    %1468 = vmatmul.mubr.f32.gmra.mrb[0].mxu0 %v1386
    %v1469 = vpop.f32.mrb[0].mxu0
    %v1470 = vadd.f32 0.0, %v1469
    %v1471 = vpop.f32.mrb[0].mxu0
    %1472 = vmatprep.mubr.f32.mxu0 0.0
    %1473 = vmatmul.mubr.f32.gmra.mrb[0].mxu0 %v1389
    %v1474 = vpop.f32.mrb[0].mxu0
    %v1475 = vadd.f32 0.0, %v1474
    %v1476 = vpop.f32.mrb[0].mxu0
    %1477 = vmatprep.mubr.f32.mxu0 0.0
    %1478 = vmatmul.mubr.f32.gmra.mrb[0].mxu0 %v1392
    %v1479 = vpop.f32.mrb[0].mxu0
    %v1480 = vadd.f32 0.0, %v1479
    %v1481 = vpop.f32.mrb[0].mxu0
    %1482 = vmatprep.mubr.f32.mxu0 0.0
    %1483 = vmatmul.mubr.f32.gmra.mrb[0].mxu0 %v1395
    %v1484 = vpop.f32.mrb[0].mxu0
    %v1485 = vadd.f32 0.0, %v1484
    %v1486 = vpop.f32.mrb[0].mxu0
    %1487 = vdwg.mxu0
    %v1488 = vsel %vm493, %v1470, -inf
    %1489 = vmax.xlane.f32.xlu0 %v1488
    %v1490 = vpop.xlane.xlu0 %1489
    %v1491 = vsel %vm493, %v1475, -inf
    %1492 = vmax.xlane.f32.xlu0 %v1491
    %v1493 = vpop.xlane.xlu0 %1492
    %v1494 = vsel %vm493, %v1480, -inf
    %1495 = vmax.xlane.f32.xlu0 %v1494
    %v1496 = vpop.xlane.xlu0 %1495
    %v1497 = vsel %vm493, %v1485, -inf
    %1498 = vmax.xlane.f32.xlu0 %v1497
    %v1499 = vpop.xlane.xlu0 %1498
    %vm1500 = vcmp.ge.f32.partialorder %v1470, %v1490
    %vm1501 = vcmp.ge.f32.partialorder %v1475, %v1493
    %vm1502 = vcmp.ge.f32.partialorder %v1480, %v1496
    %vm1503 = vcmp.ge.f32.partialorder %v1485, %v1499
    %v1504 = vsel %vm1500, %v172, 16
    %v1505 = vsel %vm1501, %v172, 16
    %v1506 = vsel %vm1502, %v172, 16
    %v1507 = vsel %vm1503, %v172, 16
    %v1508 = vsel %vm493, %v1504, 2147483647
    %v1509 = vand.u32 %v1508, 65535
    %v1510 = vshra.s32 %v1508, 16
    %v1511 = vcvt.s32.f32 %v1509
    %v1512 = vcvt.s32.f32 %v1510
    %1513 = vmin.xlane.f32.xlu0 %v1512
    %v1514 = vpop.xlane.xlu0 %1513
    %vm1515 = vcmp.eq.f32.partialorder %v1512, %v1514
    %v1516 = vsel %vm1515, %v1511, inf
    %1517 = vmin.xlane.f32.xlu0 %v1516
    %v1518 = vpop.xlane.xlu0 %1517
    %v1519 = vcvt.f32.s32 %v1518
    %v1520 = vcvt.f32.s32 %v1514
    %v1521 = vshll.u32 %v1520, 16
    %v1522 = vadd.s32 %v1521, %v1519
    %v1523 = vsel %vm493, %v1505, 2147483647
    %v1524 = vand.u32 %v1523, 65535
    %v1525 = vshra.s32 %v1523, 16
    %v1526 = vcvt.s32.f32 %v1524
    %v1527 = vcvt.s32.f32 %v1525
    %1528 = vmin.xlane.f32.xlu0 %v1527
    %v1529 = vpop.xlane.xlu0 %1528
    %vm1530 = vcmp.eq.f32.partialorder %v1527, %v1529
    %v1531 = vsel %vm1530, %v1526, inf
    %1532 = vmin.xlane.f32.xlu0 %v1531
    %v1533 = vpop.xlane.xlu0 %1532
    %v1534 = vcvt.f32.s32 %v1533
    %v1535 = vcvt.f32.s32 %v1529
    %v1536 = vshll.u32 %v1535, 16
    %v1537 = vadd.s32 %v1536, %v1534
    %v1538 = vsel %vm493, %v1506, 2147483647
    %v1539 = vand.u32 %v1538, 65535
    %v1540 = vshra.s32 %v1538, 16
    %v1541 = vcvt.s32.f32 %v1539
    %v1542 = vcvt.s32.f32 %v1540
    %1543 = vmin.xlane.f32.xlu0 %v1542
    %v1544 = vpop.xlane.xlu0 %1543
    %vm1545 = vcmp.eq.f32.partialorder %v1542, %v1544
    %v1546 = vsel %vm1545, %v1541, inf
    %1547 = vmin.xlane.f32.xlu0 %v1546
    %v1548 = vpop.xlane.xlu0 %1547
    %v1549 = vcvt.f32.s32 %v1548
    %v1550 = vcvt.f32.s32 %v1544
    %v1551 = vshll.u32 %v1550, 16
    %v1552 = vadd.s32 %v1551, %v1549
    %v1553 = vsel %vm493, %v1507, 2147483647
    %v1554 = vand.u32 %v1553, 65535
    %v1555 = vshra.s32 %v1553, 16
    %v1556 = vcvt.s32.f32 %v1554
    %v1557 = vcvt.s32.f32 %v1555
    %1558 = vmin.xlane.f32.xlu0 %v1557
    %v1559 = vpop.xlane.xlu0 %1558
    %vm1560 = vcmp.eq.f32.partialorder %v1557, %v1559
    %v1561 = vsel %vm1560, %v1556, inf
    %1562 = vmin.xlane.f32.xlu0 %v1561
    %v1563 = vpop.xlane.xlu0 %1562
    %v1564 = vcvt.f32.s32 %v1563
    %v1565 = vcvt.f32.s32 %v1559
    %v1566 = vshll.u32 %v1565, 16
    %v1567 = vadd.s32 %v1566, %v1564
    %vm1568 = vcmp.eq.s32.totalorder %v172, %v1522
    %vm1569 = vcmp.eq.s32.totalorder %v172, %v1537
    %vm1570 = vcmp.eq.s32.totalorder %v172, %v1552
    %vm1571 = vcmp.eq.s32.totalorder %v172, %v1567
    %v1572 = vsel %vm1568, 1, 0
    %v1573 = vsel %vm1569, 1, 0
    %v1574 = vsel %vm1570, 1, 0
    %v1575 = vsel %vm1571, 1, 0
    %v1576 = vcvt.s32.f32 %v1572
    %v1577 = vcvt.s32.f32 %v1573
    %v1578 = vcvt.s32.f32 %v1574
    %v1579 = vcvt.s32.f32 %v1575
    %v1581 = vsel %vm493, %v1576, 0
    %v1584 = vsel %vm493, %v1577, 0
    %v1587 = vsel %vm493, %v1578, 0
    %v1590 = vsel %vm493, %v1579, 0
    %1592 = vmatprep.subr.mxu0 0.0
    %1593 = vmatpush1.msra.mxu0 %v1352
    %1594 = vmatprep.subr.mxu0 0.0
    %1595 = vmatpush1.msra.mxu0 %v1353
    %1596 = vmatprep.subr.mxu0 0.0
    %1597 = vmatpush1.msra.mxu0 0.0
    %1598 = vmatprep.subr.mxu0 0.0
    %1599 = vmatpush1.msra.mxu0 0.0
    %1600 = vmatprep.subr.mxu0 0.0
    %1601 = vmatpush1.msra.mxu0 0.0
    %1602 = vmatprep.subr.mxu0 0.0
    %1603 = vmatpush1.msra.mxu0 0.0
    %1604 = vmatprep.subr.mxu0 0.0
    %1605 = vmatpush1.msra.mxu0 0.0
    %1606 = vmatprep.subr.mxu0 0.0
    %1607 = vmatpush1.msra.mxu0 0.0
    %1608 = vmatprep.subr.mxu0 0.0
    %1609 = vmatpush1.msra.mxu0 0.0
    %1610 = vmatprep.subr.mxu0 0.0
    %1611 = vmatpush1.msra.mxu0 0.0
    %1612 = vmatprep.subr.mxu0 0.0
    %1613 = vmatpush1.msra.mxu0 0.0
    %1614 = vmatprep.subr.mxu0 0.0
    %1615 = vmatpush1.msra.mxu0 0.0
    %1616 = vmatprep.subr.mxu0 0.0
    %1617 = vmatpush1.msra.mxu0 0.0
    %1618 = vmatprep.subr.mxu0 0.0
    %1619 = vmatpush1.msra.mxu0 0.0
    %1620 = vmatprep.subr.mxu0 0.0
    %1621 = vmatpush1.msra.mxu0 0.0
    %1622 = vmatprep.subr.mxu0 0.0
    %1623 = vmatpush1.msra.mxu0 0.0
    %1624 = vmatprep.subr.mxu0 0.0
    %1625 = vmatpush1.msra.mxu0 0.0
    %1626 = vmatprep.subr.mxu0 0.0
    %1627 = vmatpush1.msra.mxu0 0.0
    %1628 = vmatprep.subr.mxu0 0.0
    %1629 = vmatpush1.msra.mxu0 0.0
    %1630 = vmatprep.subr.mxu0 0.0
    %1631 = vmatpush1.msra.mxu0 0.0
    %1632 = vmatprep.subr.mxu0 0.0
    %1633 = vmatpush1.msra.mxu0 0.0
    %1634 = vmatprep.subr.mxu0 0.0
    %1635 = vmatpush1.msra.mxu0 0.0
    %1636 = vmatprep.subr.mxu0 0.0
    %1637 = vmatpush1.msra.mxu0 0.0
    %1638 = vmatprep.subr.mxu0 0.0
    %1639 = vmatpush1.msra.mxu0 0.0
    %1640 = vmatprep.subr.mxu0 0.0
    %1641 = vmatpush1.msra.mxu0 0.0
    %1642 = vmatprep.subr.mxu0 0.0
    %1643 = vmatpush1.msra.mxu0 0.0
    %1644 = vmatprep.subr.mxu0 0.0
    %1645 = vmatpush1.msra.mxu0 0.0
    %1646 = vmatprep.subr.mxu0 0.0
    %1647 = vmatpush1.msra.mxu0 0.0
    %1648 = vmatprep.subr.mxu0 0.0
    %1649 = vmatpush1.msra.mxu0 0.0
    %1650 = vmatprep.subr.mxu0 0.0
    %1651 = vmatpush1.msra.mxu0 0.0
    %1652 = vmatprep.subr.mxu0 0.0
    %1653 = vmatpush1.msra.mxu0 0.0
    %1654 = vmatprep.subr.mxu0 0.0
    %1655 = vmatpush1.msra.mxu0 0.0
    %1656 = vmatprep.mubr.f32.mxu0 0.0
    %1657 = vmatmul.mubr.f32.gmra.mrb[0].mxu0 %v1581
    %v1658 = vpop.f32.mrb[0].mxu0
    %v1659 = vadd.f32 0.0, %v1658
    %v1660 = vpop.f32.mrb[0].mxu0
    %1661 = vmatprep.mubr.f32.mxu0 0.0
    %1662 = vmatmul.mubr.f32.gmra.mrb[0].mxu0 %v1584
    %v1663 = vpop.f32.mrb[0].mxu0
    %v1664 = vadd.f32 0.0, %v1663
    %v1665 = vpop.f32.mrb[0].mxu0
    %1666 = vmatprep.mubr.f32.mxu0 0.0
    %1667 = vmatmul.mubr.f32.gmra.mrb[0].mxu0 %v1587
    %v1668 = vpop.f32.mrb[0].mxu0
    %v1669 = vadd.f32 0.0, %v1668
    %v1670 = vpop.f32.mrb[0].mxu0
    %1671 = vmatprep.mubr.f32.mxu0 0.0
    %1672 = vmatmul.mubr.f32.gmra.mrb[0].mxu0 %v1590
    %v1673 = vpop.f32.mrb[0].mxu0
    %v1674 = vadd.f32 0.0, %v1673
    %v1675 = vpop.f32.mrb[0].mxu0
    %1676 = vdwg.mxu0
    %v1677 = vsub.f32 %v1381, %v1659
    %v1678 = vsub.f32 %v1382, %v1664
    %v1679 = vsub.f32 %v1383, %v1669
    %v1680 = vsub.f32 %v1384, %v1674
    %v1681 = vmul.f32 %v1677, %v1677
    %v1682 = vmul.f32 %v1678, %v1678
    %v1683 = vmul.f32 %v1679, %v1679
    %v1684 = vmul.f32 %v1680, %v1680
    %v1685 = vadd.f32 %v1019, %v1681
    %v1686 = vadd.f32 %v1020, %v1682
    %v1687 = vadd.f32 %v1021, %v1683
    %v1688 = vadd.f32 %v1022, %v1684
    %v1689 = vsel %vm185, %v1681, 0.0
    %1690 = vadd.xlane.f32.xlu0 %v1689
    %v1691 = vpop.xlane.xlu0 %1690
    %v1692 = vsel %vm185, %v1682, 0.0
    %1693 = vadd.xlane.f32.xlu0 %v1692
    %v1694 = vpop.xlane.xlu0 %1693
    %v1695 = vsel %vm185, %v1683, 0.0
    %1696 = vadd.xlane.f32.xlu0 %v1695
    %v1697 = vpop.xlane.xlu0 %1696
    %v1698 = vsel %vm185, %v1684, 0.0
    %1699 = vadd.xlane.f32.xlu0 %v1698
    %v1700 = vpop.xlane.xlu0 %1699
    %v1701 = vadd.f32 %v1691, 1e-12
    %v1702 = vadd.f32 %v1694, 1e-12
    %v1703 = vadd.f32 %v1697, 1e-12
    %v1704 = vadd.f32 %v1700, 1e-12
    %v1705 = vrsqrt.pop %v1701
    %v1706 = vrsqrt.pop %v1702
    %v1707 = vrsqrt.pop %v1703
    %v1708 = vrsqrt.pop %v1704
    %v1709 = vmul.f32 %v1677, %v1705
    %v1710 = vmul.f32 %v1678, %v1706
    %v1711 = vmul.f32 %v1679, %v1707
    %v1712 = vmul.f32 %v1680, %v1708
    %v1714 = vsel %vm185, %v1709, 0
    %v1717 = vsel %vm185, %v1710, 0
    %v1720 = vsel %vm185, %v1711, 0
    %v1723 = vsel %vm185, %v1712, 0
    %v1726 = vsel %vm185, %v1355, 0
    %v1729 = vsel %vm185, %v1356, 0
    %1731 = vmatprep.subr.mxu0 0.0
    %1732 = vmatpush1.xpose.msra.mxu0 %v1726
    %1733 = vmatprep.subr.mxu0 0.0
    %1734 = vmatpush1.xpose.msra.mxu0 %v1729
    %1735 = vmatprep.subr.mxu0 0.0
    %1736 = vmatpush1.xpose.msra.mxu0 0.0
    %1737 = vmatprep.subr.mxu0 0.0
    %1738 = vmatpush1.xpose.msra.mxu0 0.0
    %1739 = vmatprep.subr.mxu0 0.0
    %1740 = vmatpush1.xpose.msra.mxu0 0.0
    %1741 = vmatprep.subr.mxu0 0.0
    %1742 = vmatpush1.xpose.msra.mxu0 0.0
    %1743 = vmatprep.subr.mxu0 0.0
    %1744 = vmatpush1.xpose.msra.mxu0 0.0
    %1745 = vmatprep.subr.mxu0 0.0
    %1746 = vmatpush1.xpose.msra.mxu0 0.0
    %1747 = vmatprep.subr.mxu0 0.0
    %1748 = vmatpush1.xpose.msra.mxu0 0.0
    %1749 = vmatprep.subr.mxu0 0.0
    %1750 = vmatpush1.xpose.msra.mxu0 0.0
    %1751 = vmatprep.subr.mxu0 0.0
    %1752 = vmatpush1.xpose.msra.mxu0 0.0
    %1753 = vmatprep.subr.mxu0 0.0
    %1754 = vmatpush1.xpose.msra.mxu0 0.0
    %1755 = vmatprep.subr.mxu0 0.0
    %1756 = vmatpush1.xpose.msra.mxu0 0.0
    %1757 = vmatprep.subr.mxu0 0.0
    %1758 = vmatpush1.xpose.msra.mxu0 0.0
    %1759 = vmatprep.subr.mxu0 0.0
    %1760 = vmatpush1.xpose.msra.mxu0 0.0
    %1761 = vmatprep.subr.mxu0 0.0
    %1762 = vmatpush1.xpose.msra.mxu0 0.0
    %1763 = vmatprep.subr.mxu0 0.0
    %1764 = vmatpush1.xpose.msra.mxu0 0.0
    %1765 = vmatprep.subr.mxu0 0.0
    %1766 = vmatpush1.xpose.msra.mxu0 0.0
    %1767 = vmatprep.subr.mxu0 0.0
    %1768 = vmatpush1.xpose.msra.mxu0 0.0
    %1769 = vmatprep.subr.mxu0 0.0
    %1770 = vmatpush1.xpose.msra.mxu0 0.0
    %1771 = vmatprep.subr.mxu0 0.0
    %1772 = vmatpush1.xpose.msra.mxu0 0.0
    %1773 = vmatprep.subr.mxu0 0.0
    %1774 = vmatpush1.xpose.msra.mxu0 0.0
    %1775 = vmatprep.subr.mxu0 0.0
    %1776 = vmatpush1.xpose.msra.mxu0 0.0
    %1777 = vmatprep.subr.mxu0 0.0
    %1778 = vmatpush1.xpose.msra.mxu0 0.0
    %1779 = vmatprep.subr.mxu0 0.0
    %1780 = vmatpush1.xpose.msra.mxu0 0.0
    %1781 = vmatprep.subr.mxu0 0.0
    %1782 = vmatpush1.xpose.msra.mxu0 0.0
    %1783 = vmatprep.subr.mxu0 0.0
    %1784 = vmatpush1.xpose.msra.mxu0 0.0
    %1785 = vmatprep.subr.mxu0 0.0
    %1786 = vmatpush1.xpose.msra.mxu0 0.0
    %1787 = vmatprep.subr.mxu0 0.0
    %1788 = vmatpush1.xpose.msra.mxu0 0.0
    %1789 = vmatprep.subr.mxu0 0.0
    %1790 = vmatpush1.xpose.msra.mxu0 0.0
    %1791 = vmatprep.subr.mxu0 0.0
    %1792 = vmatpush1.xpose.msra.mxu0 0.0
    %1793 = vmatprep.subr.mxu0 0.0
    %1794 = vmatpush1.xpose.msra.mxu0 0.0
    %1795 = vmatprep.mubr.f32.mxu0 0.0
    %1796 = vmatmul.mubr.f32.gmra.mrb[0].mxu0 %v1714
    %v1797 = vpop.f32.mrb[0].mxu0
    %v1798 = vadd.f32 0.0, %v1797
    %v1799 = vpop.f32.mrb[0].mxu0
    %1800 = vmatprep.mubr.f32.mxu0 0.0
    %1801 = vmatmul.mubr.f32.gmra.mrb[0].mxu0 %v1717
    %v1802 = vpop.f32.mrb[0].mxu0
    %v1803 = vadd.f32 0.0, %v1802
    %v1804 = vpop.f32.mrb[0].mxu0
    %1805 = vmatprep.mubr.f32.mxu0 0.0
    %1806 = vmatmul.mubr.f32.gmra.mrb[0].mxu0 %v1720
    %v1807 = vpop.f32.mrb[0].mxu0
    %v1808 = vadd.f32 0.0, %v1807
    %v1809 = vpop.f32.mrb[0].mxu0
    %1810 = vmatprep.mubr.f32.mxu0 0.0
    %1811 = vmatmul.mubr.f32.gmra.mrb[0].mxu0 %v1723
    %v1812 = vpop.f32.mrb[0].mxu0
    %v1813 = vadd.f32 0.0, %v1812
    %v1814 = vpop.f32.mrb[0].mxu0
    %1815 = vdwg.mxu0
    %v1816 = vsel %vm493, %v1798, -inf
    %1817 = vmax.xlane.f32.xlu0 %v1816
    %v1818 = vpop.xlane.xlu0 %1817
    %v1819 = vsel %vm493, %v1803, -inf
    %1820 = vmax.xlane.f32.xlu0 %v1819
    %v1821 = vpop.xlane.xlu0 %1820
    %v1822 = vsel %vm493, %v1808, -inf
    %1823 = vmax.xlane.f32.xlu0 %v1822
    %v1824 = vpop.xlane.xlu0 %1823
    %v1825 = vsel %vm493, %v1813, -inf
    %1826 = vmax.xlane.f32.xlu0 %v1825
    %v1827 = vpop.xlane.xlu0 %1826
    %vm1828 = vcmp.ge.f32.partialorder %v1798, %v1818
    %vm1829 = vcmp.ge.f32.partialorder %v1803, %v1821
    %vm1830 = vcmp.ge.f32.partialorder %v1808, %v1824
    %vm1831 = vcmp.ge.f32.partialorder %v1813, %v1827
    %v1832 = vsel %vm1828, %v172, 16
    %v1833 = vsel %vm1829, %v172, 16
    %v1834 = vsel %vm1830, %v172, 16
    %v1835 = vsel %vm1831, %v172, 16
    %v1836 = vsel %vm493, %v1832, 2147483647
    %v1837 = vand.u32 %v1836, 65535
    %v1838 = vshra.s32 %v1836, 16
    %v1839 = vcvt.s32.f32 %v1837
    %v1840 = vcvt.s32.f32 %v1838
    %1841 = vmin.xlane.f32.xlu0 %v1840
    %v1842 = vpop.xlane.xlu0 %1841
    %vm1843 = vcmp.eq.f32.partialorder %v1840, %v1842
    %v1844 = vsel %vm1843, %v1839, inf
    %1845 = vmin.xlane.f32.xlu0 %v1844
    %v1846 = vpop.xlane.xlu0 %1845
    %v1847 = vcvt.f32.s32 %v1846
    %v1848 = vcvt.f32.s32 %v1842
    %v1849 = vshll.u32 %v1848, 16
    %v1850 = vadd.s32 %v1849, %v1847
    %v1851 = vsel %vm493, %v1833, 2147483647
    %v1852 = vand.u32 %v1851, 65535
    %v1853 = vshra.s32 %v1851, 16
    %v1854 = vcvt.s32.f32 %v1852
    %v1855 = vcvt.s32.f32 %v1853
    %1856 = vmin.xlane.f32.xlu0 %v1855
    %v1857 = vpop.xlane.xlu0 %1856
    %vm1858 = vcmp.eq.f32.partialorder %v1855, %v1857
    %v1859 = vsel %vm1858, %v1854, inf
    %1860 = vmin.xlane.f32.xlu0 %v1859
    %v1861 = vpop.xlane.xlu0 %1860
    %v1862 = vcvt.f32.s32 %v1861
    %v1863 = vcvt.f32.s32 %v1857
    %v1864 = vshll.u32 %v1863, 16
    %v1865 = vadd.s32 %v1864, %v1862
    %v1866 = vsel %vm493, %v1834, 2147483647
    %v1867 = vand.u32 %v1866, 65535
    %v1868 = vshra.s32 %v1866, 16
    %v1869 = vcvt.s32.f32 %v1867
    %v1870 = vcvt.s32.f32 %v1868
    %1871 = vmin.xlane.f32.xlu0 %v1870
    %v1872 = vpop.xlane.xlu0 %1871
    %vm1873 = vcmp.eq.f32.partialorder %v1870, %v1872
    %v1874 = vsel %vm1873, %v1869, inf
    %1875 = vmin.xlane.f32.xlu0 %v1874
    %v1876 = vpop.xlane.xlu0 %1875
    %v1877 = vcvt.f32.s32 %v1876
    %v1878 = vcvt.f32.s32 %v1872
    %v1879 = vshll.u32 %v1878, 16
    %v1880 = vadd.s32 %v1879, %v1877
    %v1881 = vsel %vm493, %v1835, 2147483647
    %v1882 = vand.u32 %v1881, 65535
    %v1883 = vshra.s32 %v1881, 16
    %v1884 = vcvt.s32.f32 %v1882
    %v1885 = vcvt.s32.f32 %v1883
    %1886 = vmin.xlane.f32.xlu0 %v1885
    %v1887 = vpop.xlane.xlu0 %1886
    %vm1888 = vcmp.eq.f32.partialorder %v1885, %v1887
    %v1889 = vsel %vm1888, %v1884, inf
    %1890 = vmin.xlane.f32.xlu0 %v1889
    %v1891 = vpop.xlane.xlu0 %1890
    %v1892 = vcvt.f32.s32 %v1891
    %v1893 = vcvt.f32.s32 %v1887
    %v1894 = vshll.u32 %v1893, 16
    %v1895 = vadd.s32 %v1894, %v1892
    %vm1896 = vcmp.eq.s32.totalorder %v172, %v1850
    %vm1897 = vcmp.eq.s32.totalorder %v172, %v1865
    %vm1898 = vcmp.eq.s32.totalorder %v172, %v1880
    %vm1899 = vcmp.eq.s32.totalorder %v172, %v1895
    %v1900 = vsel %vm1896, 1, 0
    %v1901 = vsel %vm1897, 1, 0
    %v1902 = vsel %vm1898, 1, 0
    %v1903 = vsel %vm1899, 1, 0
    %v1904 = vcvt.s32.f32 %v1900
    %v1905 = vcvt.s32.f32 %v1901
    %v1906 = vcvt.s32.f32 %v1902
    %v1907 = vcvt.s32.f32 %v1903
    %v1909 = vsel %vm493, %v1904, 0
    %v1912 = vsel %vm493, %v1905, 0
    %v1915 = vsel %vm493, %v1906, 0
    %v1918 = vsel %vm493, %v1907, 0
    %1920 = vmatprep.subr.mxu0 0.0
    %1921 = vmatpush1.msra.mxu0 %v1355
    %1922 = vmatprep.subr.mxu0 0.0
    %1923 = vmatpush1.msra.mxu0 %v1356
    %1924 = vmatprep.subr.mxu0 0.0
    %1925 = vmatpush1.msra.mxu0 0.0
    %1926 = vmatprep.subr.mxu0 0.0
    %1927 = vmatpush1.msra.mxu0 0.0
    %1928 = vmatprep.subr.mxu0 0.0
    %1929 = vmatpush1.msra.mxu0 0.0
    %1930 = vmatprep.subr.mxu0 0.0
    %1931 = vmatpush1.msra.mxu0 0.0
    %1932 = vmatprep.subr.mxu0 0.0
    %1933 = vmatpush1.msra.mxu0 0.0
    %1934 = vmatprep.subr.mxu0 0.0
    %1935 = vmatpush1.msra.mxu0 0.0
    %1936 = vmatprep.subr.mxu0 0.0
    %1937 = vmatpush1.msra.mxu0 0.0
    %1938 = vmatprep.subr.mxu0 0.0
    %1939 = vmatpush1.msra.mxu0 0.0
    %1940 = vmatprep.subr.mxu0 0.0
    %1941 = vmatpush1.msra.mxu0 0.0
    %1942 = vmatprep.subr.mxu0 0.0
    %1943 = vmatpush1.msra.mxu0 0.0
    %1944 = vmatprep.subr.mxu0 0.0
    %1945 = vmatpush1.msra.mxu0 0.0
    %1946 = vmatprep.subr.mxu0 0.0
    %1947 = vmatpush1.msra.mxu0 0.0
    %1948 = vmatprep.subr.mxu0 0.0
    %1949 = vmatpush1.msra.mxu0 0.0
    %1950 = vmatprep.subr.mxu0 0.0
    %1951 = vmatpush1.msra.mxu0 0.0
    %1952 = vmatprep.subr.mxu0 0.0
    %1953 = vmatpush1.msra.mxu0 0.0
    %1954 = vmatprep.subr.mxu0 0.0
    %1955 = vmatpush1.msra.mxu0 0.0
    %1956 = vmatprep.subr.mxu0 0.0
    %1957 = vmatpush1.msra.mxu0 0.0
    %1958 = vmatprep.subr.mxu0 0.0
    %1959 = vmatpush1.msra.mxu0 0.0
    %1960 = vmatprep.subr.mxu0 0.0
    %1961 = vmatpush1.msra.mxu0 0.0
    %1962 = vmatprep.subr.mxu0 0.0
    %1963 = vmatpush1.msra.mxu0 0.0
    %1964 = vmatprep.subr.mxu0 0.0
    %1965 = vmatpush1.msra.mxu0 0.0
    %1966 = vmatprep.subr.mxu0 0.0
    %1967 = vmatpush1.msra.mxu0 0.0
    %1968 = vmatprep.subr.mxu0 0.0
    %1969 = vmatpush1.msra.mxu0 0.0
    %1970 = vmatprep.subr.mxu0 0.0
    %1971 = vmatpush1.msra.mxu0 0.0
    %1972 = vmatprep.subr.mxu0 0.0
    %1973 = vmatpush1.msra.mxu0 0.0
    %1974 = vmatprep.subr.mxu0 0.0
    %1975 = vmatpush1.msra.mxu0 0.0
    %1976 = vmatprep.subr.mxu0 0.0
    %1977 = vmatpush1.msra.mxu0 0.0
    %1978 = vmatprep.subr.mxu0 0.0
    %1979 = vmatpush1.msra.mxu0 0.0
    %1980 = vmatprep.subr.mxu0 0.0
    %1981 = vmatpush1.msra.mxu0 0.0
    %1982 = vmatprep.subr.mxu0 0.0
    %1983 = vmatpush1.msra.mxu0 0.0
    %1984 = vmatprep.mubr.f32.mxu0 0.0
    %1985 = vmatmul.mubr.f32.gmra.mrb[0].mxu0 %v1909
    %v1986 = vpop.f32.mrb[0].mxu0
    %v1987 = vadd.f32 0.0, %v1986
    %v1988 = vpop.f32.mrb[0].mxu0
    %1989 = vmatprep.mubr.f32.mxu0 0.0
    %1990 = vmatmul.mubr.f32.gmra.mrb[0].mxu0 %v1912
    %v1991 = vpop.f32.mrb[0].mxu0
    %v1992 = vadd.f32 0.0, %v1991
    %v1993 = vpop.f32.mrb[0].mxu0
    %1994 = vmatprep.mubr.f32.mxu0 0.0
    %1995 = vmatmul.mubr.f32.gmra.mrb[0].mxu0 %v1915
    %v1996 = vpop.f32.mrb[0].mxu0
    %v1997 = vadd.f32 0.0, %v1996
    %v1998 = vpop.f32.mrb[0].mxu0
    %1999 = vmatprep.mubr.f32.mxu0 0.0
    %2000 = vmatmul.mubr.f32.gmra.mrb[0].mxu0 %v1918
    %v2001 = vpop.f32.mrb[0].mxu0
    %v2002 = vadd.f32 0.0, %v2001
    %v2003 = vpop.f32.mrb[0].mxu0
    %2004 = vdwg.mxu0
    %v2005 = vsub.f32 %v1709, %v1987
    %v2006 = vsub.f32 %v1710, %v1992
    %v2007 = vsub.f32 %v1711, %v1997
    %v2008 = vsub.f32 %v1712, %v2002
    %v2009 = vmul.f32 %v2005, %v2005
    %v2010 = vmul.f32 %v2006, %v2006
    %v2011 = vmul.f32 %v2007, %v2007
    %v2012 = vmul.f32 %v2008, %v2008
    %v2013 = vadd.f32 %v1685, %v2009
    %v2014 = vadd.f32 %v1686, %v2010
    %v2015 = vadd.f32 %v1687, %v2011
    %v2016 = vadd.f32 %v1688, %v2012
    %v2017 = vcvt.s32.f32 %v1522
    %v2018 = vcvt.s32.f32 %v1537
    %v2019 = vcvt.s32.f32 %v1552
    %v2020 = vcvt.s32.f32 %v1567
    %2021 = vmatprep.subr.mxu0 0.0
    %2022 = vmatpush1.msra.mxu0 %v2017
    %2023 = vmatprep.subr.mxu0 0.0
    %2024 = vmatpush1.msra.mxu0 %v2018
    %2025 = vmatprep.subr.mxu0 0.0
    %2026 = vmatpush1.msra.mxu0 %v2019
    %2027 = vmatprep.subr.mxu0 0.0
    %2028 = vmatpush1.msra.mxu0 %v2020
    %2029 = vmatprep.subr.mxu0 0.0
    %2030 = vmatpush1.msra.mxu0 0.0
    %2031 = vmatprep.subr.mxu0 0.0
    %2032 = vmatpush1.msra.mxu0 0.0
    %2033 = vmatprep.subr.mxu0 0.0
    %2034 = vmatpush1.msra.mxu0 0.0
    %2035 = vmatprep.subr.mxu0 0.0
    %2036 = vmatpush1.msra.mxu0 0.0
    %2037 = vmatprep.subr.mxu0 0.0
    %2038 = vmatpush1.msra.mxu0 0.0
    %2039 = vmatprep.subr.mxu0 0.0
    %2040 = vmatpush1.msra.mxu0 0.0
    %2041 = vmatprep.subr.mxu0 0.0
    %2042 = vmatpush1.msra.mxu0 0.0
    %2043 = vmatprep.subr.mxu0 0.0
    %2044 = vmatpush1.msra.mxu0 0.0
    %2045 = vmatprep.subr.mxu0 0.0
    %2046 = vmatpush1.msra.mxu0 0.0
    %2047 = vmatprep.subr.mxu0 0.0
    %2048 = vmatpush1.msra.mxu0 0.0
    %2049 = vmatprep.subr.mxu0 0.0
    %2050 = vmatpush1.msra.mxu0 0.0
    %2051 = vmatprep.subr.mxu0 0.0
    %2052 = vmatpush1.msra.mxu0 0.0
    %2053 = vmatprep.subr.mxu0 0.0
    %2054 = vmatpush1.msra.mxu0 0.0
    %2055 = vmatprep.subr.mxu0 0.0
    %2056 = vmatpush1.msra.mxu0 0.0
    %2057 = vmatprep.subr.mxu0 0.0
    %2058 = vmatpush1.msra.mxu0 0.0
    %2059 = vmatprep.subr.mxu0 0.0
    %2060 = vmatpush1.msra.mxu0 0.0
    %2061 = vmatprep.subr.mxu0 0.0
    %2062 = vmatpush1.msra.mxu0 0.0
    %2063 = vmatprep.subr.mxu0 0.0
    %2064 = vmatpush1.msra.mxu0 0.0
    %2065 = vmatprep.subr.mxu0 0.0
    %2066 = vmatpush1.msra.mxu0 0.0
    %2067 = vmatprep.subr.mxu0 0.0
    %2068 = vmatpush1.msra.mxu0 0.0
    %2069 = vmatprep.subr.mxu0 0.0
    %2070 = vmatpush1.msra.mxu0 0.0
    %2071 = vmatprep.subr.mxu0 0.0
    %2072 = vmatpush1.msra.mxu0 0.0
    %2073 = vmatprep.subr.mxu0 0.0
    %2074 = vmatpush1.msra.mxu0 0.0
    %2075 = vmatprep.subr.mxu0 0.0
    %2076 = vmatpush1.msra.mxu0 0.0
    %2077 = vmatprep.subr.mxu0 0.0
    %2078 = vmatpush1.msra.mxu0 0.0
    %2079 = vmatprep.subr.mxu0 0.0
    %2080 = vmatpush1.msra.mxu0 0.0
    %2081 = vmatprep.subr.mxu0 0.0
    %2082 = vmatpush1.msra.mxu0 0.0
    %2083 = vmatprep.subr.mxu0 0.0
    %2084 = vmatpush1.msra.mxu0 0.0
    %2085 = vmatprep.mubr.f32.mxu0 0.0
    %2086 = vmatmul.mubr.f32.gmra.mrb[0].mxu0 %v1028
    %v2087 = vpop.f32.mrb[0].mxu0
    %v2088 = vadd.f32 0.0, %v2087
    %v2089 = vpop.f32.mrb[0].mxu0
    %2090 = vdwg.mxu0
    %v2091 = vcvt.f32.s32.to.zero.pseudo %v2088
    %2092 = vrot.lane.b32.xlu0 %v2091, 2
    %v2093 = vpop.permute.xlu0 %2092
    %vm2094 = vcmask 17424
    %2095 = vst.msk [vmem:[#allocation7] sm:$0x3] %vm2094, %v2093
    %v2096 = vcvt.s32.f32 %v1850
    %v2097 = vcvt.s32.f32 %v1865
    %v2098 = vcvt.s32.f32 %v1880
    %v2099 = vcvt.s32.f32 %v1895
    %2100 = vmatprep.subr.mxu0 0.0
    %2101 = vmatpush1.msra.mxu0 %v2096
    %2102 = vmatprep.subr.mxu0 0.0
    %2103 = vmatpush1.msra.mxu0 %v2097
    %2104 = vmatprep.subr.mxu0 0.0
    %2105 = vmatpush1.msra.mxu0 %v2098
    %2106 = vmatprep.subr.mxu0 0.0
    %2107 = vmatpush1.msra.mxu0 %v2099
    %2108 = vmatprep.subr.mxu0 0.0
    %2109 = vmatpush1.msra.mxu0 0.0
    %2110 = vmatprep.subr.mxu0 0.0
    %2111 = vmatpush1.msra.mxu0 0.0
    %2112 = vmatprep.subr.mxu0 0.0
    %2113 = vmatpush1.msra.mxu0 0.0
    %2114 = vmatprep.subr.mxu0 0.0
    %2115 = vmatpush1.msra.mxu0 0.0
    %2116 = vmatprep.subr.mxu0 0.0
    %2117 = vmatpush1.msra.mxu0 0.0
    %2118 = vmatprep.subr.mxu0 0.0
    %2119 = vmatpush1.msra.mxu0 0.0
    %2120 = vmatprep.subr.mxu0 0.0
    %2121 = vmatpush1.msra.mxu0 0.0
    %2122 = vmatprep.subr.mxu0 0.0
    %2123 = vmatpush1.msra.mxu0 0.0
    %2124 = vmatprep.subr.mxu0 0.0
    %2125 = vmatpush1.msra.mxu0 0.0
    %2126 = vmatprep.subr.mxu0 0.0
    %2127 = vmatpush1.msra.mxu0 0.0
    %2128 = vmatprep.subr.mxu0 0.0
    %2129 = vmatpush1.msra.mxu0 0.0
    %2130 = vmatprep.subr.mxu0 0.0
    %2131 = vmatpush1.msra.mxu0 0.0
    %2132 = vmatprep.subr.mxu0 0.0
    %2133 = vmatpush1.msra.mxu0 0.0
    %2134 = vmatprep.subr.mxu0 0.0
    %2135 = vmatpush1.msra.mxu0 0.0
    %2136 = vmatprep.subr.mxu0 0.0
    %2137 = vmatpush1.msra.mxu0 0.0
    %2138 = vmatprep.subr.mxu0 0.0
    %2139 = vmatpush1.msra.mxu0 0.0
    %2140 = vmatprep.subr.mxu0 0.0
    %2141 = vmatpush1.msra.mxu0 0.0
    %2142 = vmatprep.subr.mxu0 0.0
    %2143 = vmatpush1.msra.mxu0 0.0
    %2144 = vmatprep.subr.mxu0 0.0
    %2145 = vmatpush1.msra.mxu0 0.0
    %2146 = vmatprep.subr.mxu0 0.0
    %2147 = vmatpush1.msra.mxu0 0.0
    %2148 = vmatprep.subr.mxu0 0.0
    %2149 = vmatpush1.msra.mxu0 0.0
    %2150 = vmatprep.subr.mxu0 0.0
    %2151 = vmatpush1.msra.mxu0 0.0
    %2152 = vmatprep.subr.mxu0 0.0
    %2153 = vmatpush1.msra.mxu0 0.0
    %2154 = vmatprep.subr.mxu0 0.0
    %2155 = vmatpush1.msra.mxu0 0.0
    %2156 = vmatprep.subr.mxu0 0.0
    %2157 = vmatpush1.msra.mxu0 0.0
    %2158 = vmatprep.subr.mxu0 0.0
    %2159 = vmatpush1.msra.mxu0 0.0
    %2160 = vmatprep.subr.mxu0 0.0
    %2161 = vmatpush1.msra.mxu0 0.0
    %2162 = vmatprep.subr.mxu0 0.0
    %2163 = vmatpush1.msra.mxu0 0.0
    %2164 = vmatprep.mubr.f32.mxu0 0.0
    %2165 = vmatmul.mubr.f32.gmra.mrb[0].mxu0 %v1028
    %v2166 = vpop.f32.mrb[0].mxu0
    %v2167 = vadd.f32 0.0, %v2166
    %v2168 = vpop.f32.mrb[0].mxu0
    %2169 = vdwg.mxu0
    %v2170 = vcvt.f32.s32.to.zero.pseudo %v2167
    %2171 = vrot.lane.b32.xlu0 %v2170, 3
    %v2172 = vpop.permute.xlu0 %2171
    %vm2173 = vcmask 25624
    %2174 = vst.msk [vmem:[#allocation7] sm:$0x3] %vm2173, %v2172
    %vm2175 = vcmask 254976
    %v2176 = vsel %vm2175, %v170, 0.0
    %2177 = vadd.xlane.f32.xlu0 %v2176
    %v2178 = vpop.xlane.xlu0 %2177
    %2179 = vmatprep.subr.mxu0 0.0
    %2180 = vmatpush1.msra.mxu0 %v1347
    %2181 = vmatprep.subr.mxu0 0.0
    %2182 = vmatpush1.msra.mxu0 %v1348
    %2183 = vmatprep.subr.mxu0 0.0
    %2184 = vmatpush1.msra.mxu0 %v1349
    %2185 = vmatprep.subr.mxu0 0.0
    %2186 = vmatpush1.msra.mxu0 %v1350
    %2187 = vmatprep.subr.mxu0 0.0
    %2188 = vmatpush1.msra.mxu0 0.0
    %2189 = vmatprep.subr.mxu0 0.0
    %2190 = vmatpush1.msra.mxu0 0.0
    %2191 = vmatprep.subr.mxu0 0.0
    %2192 = vmatpush1.msra.mxu0 0.0
    %2193 = vmatprep.subr.mxu0 0.0
    %2194 = vmatpush1.msra.mxu0 0.0
    %2195 = vmatprep.subr.mxu0 0.0
    %2196 = vmatpush1.msra.mxu0 0.0
    %2197 = vmatprep.subr.mxu0 0.0
    %2198 = vmatpush1.msra.mxu0 0.0
    %2199 = vmatprep.subr.mxu0 0.0
    %2200 = vmatpush1.msra.mxu0 0.0
    %2201 = vmatprep.subr.mxu0 0.0
    %2202 = vmatpush1.msra.mxu0 0.0
    %2203 = vmatprep.subr.mxu0 0.0
    %2204 = vmatpush1.msra.mxu0 0.0
    %2205 = vmatprep.subr.mxu0 0.0
    %2206 = vmatpush1.msra.mxu0 0.0
    %2207 = vmatprep.subr.mxu0 0.0
    %2208 = vmatpush1.msra.mxu0 0.0
    %2209 = vmatprep.subr.mxu0 0.0
    %2210 = vmatpush1.msra.mxu0 0.0
    %2211 = vmatprep.subr.mxu0 0.0
    %2212 = vmatpush1.msra.mxu0 0.0
    %2213 = vmatprep.subr.mxu0 0.0
    %2214 = vmatpush1.msra.mxu0 0.0
    %2215 = vmatprep.subr.mxu0 0.0
    %2216 = vmatpush1.msra.mxu0 0.0
    %2217 = vmatprep.subr.mxu0 0.0
    %2218 = vmatpush1.msra.mxu0 0.0
    %2219 = vmatprep.subr.mxu0 0.0
    %2220 = vmatpush1.msra.mxu0 0.0
    %2221 = vmatprep.subr.mxu0 0.0
    %2222 = vmatpush1.msra.mxu0 0.0
    %2223 = vmatprep.subr.mxu0 0.0
    %2224 = vmatpush1.msra.mxu0 0.0
    %2225 = vmatprep.subr.mxu0 0.0
    %2226 = vmatpush1.msra.mxu0 0.0
    %2227 = vmatprep.subr.mxu0 0.0
    %2228 = vmatpush1.msra.mxu0 0.0
    %2229 = vmatprep.subr.mxu0 0.0
    %2230 = vmatpush1.msra.mxu0 0.0
    %2231 = vmatprep.subr.mxu0 0.0
    %2232 = vmatpush1.msra.mxu0 0.0
    %2233 = vmatprep.subr.mxu0 0.0
    %2234 = vmatpush1.msra.mxu0 0.0
    %2235 = vmatprep.subr.mxu0 0.0
    %2236 = vmatpush1.msra.mxu0 0.0
    %2237 = vmatprep.subr.mxu0 0.0
    %2238 = vmatpush1.msra.mxu0 0.0
    %2239 = vmatprep.subr.mxu0 0.0
    %2240 = vmatpush1.msra.mxu0 0.0
    %2241 = vmatprep.subr.mxu0 0.0
    %2242 = vmatpush1.msra.mxu0 0.0
    %2243 = vmatprep.mubr.f32.mxu0 0.0
    %2244 = vmatmul.mubr.f32.gmra.mrb[0].mxu0 %v1028
    %v2245 = vpop.f32.mrb[0].mxu0
    %v2246 = vadd.f32 0.0, %v2245
    %v2247 = vpop.f32.mrb[0].mxu0
    %2248 = vdwg.mxu0
    %v2249 = vmax.f32 %v2178, 1.0
    %v2250 = vrcp.pop %v2249
    %v2251 = vmul.f32 %v2246, %v2250
    %v2252 = vld [vmem:[%s8] sm:$0xff]
    %v2253 = vld [vmem:[%s8 + $0x8] sm:$0xff]
    %v2254 = vld [vmem:[%s8 + $0x10] sm:$0xff]
    %v2255 = vld [vmem:[%s8 + $0x18] sm:$0xff]
    %v2256 = vld [vmem:[%s9] sm:$0x1]
    %v2258 = vlaneseq
    %v2259 = vshrl.u32 %v2258, 7
    %v2260 = vsub.s32 0, %v2259
    %v2261 = vrot.slane %v2256, %v2260
    %v2264 = vsel %vm185, %v2251, 0
    %2266 = vmatprep.subr.mxu0 0.0
    %2267 = vmatpush1.msra.mxu0 %v2252
    %2268 = vmatprep.subr.mxu0 0.0
    %2269 = vmatpush1.msra.mxu0 %v2253
    %2270 = vmatprep.subr.mxu0 0.0
    %2271 = vmatpush1.msra.mxu0 %v2254
    %2272 = vmatprep.subr.mxu0 0.0
    %2273 = vmatpush1.msra.mxu0 %v2255
    %2274 = vmatprep.subr.mxu0 0.0
    %2275 = vmatpush1.msra.mxu0 0.0
    %2276 = vmatprep.subr.mxu0 0.0
    %2277 = vmatpush1.msra.mxu0 0.0
    %2278 = vmatprep.subr.mxu0 0.0
    %2279 = vmatpush1.msra.mxu0 0.0
    %2280 = vmatprep.subr.mxu0 0.0
    %2281 = vmatpush1.msra.mxu0 0.0
    %2282 = vmatprep.subr.mxu0 0.0
    %2283 = vmatpush1.msra.mxu0 0.0
    %2284 = vmatprep.subr.mxu0 0.0
    %2285 = vmatpush1.msra.mxu0 0.0
    %2286 = vmatprep.subr.mxu0 0.0
    %2287 = vmatpush1.msra.mxu0 0.0
    %2288 = vmatprep.subr.mxu0 0.0
    %2289 = vmatpush1.msra.mxu0 0.0
    %2290 = vmatprep.subr.mxu0 0.0
    %2291 = vmatpush1.msra.mxu0 0.0
    %2292 = vmatprep.subr.mxu0 0.0
    %2293 = vmatpush1.msra.mxu0 0.0
    %2294 = vmatprep.subr.mxu0 0.0
    %2295 = vmatpush1.msra.mxu0 0.0
    %2296 = vmatprep.subr.mxu0 0.0
    %2297 = vmatpush1.msra.mxu0 0.0
    %2298 = vmatprep.subr.mxu0 0.0
    %2299 = vmatpush1.msra.mxu0 0.0
    %2300 = vmatprep.subr.mxu0 0.0
    %2301 = vmatpush1.msra.mxu0 0.0
    %2302 = vmatprep.subr.mxu0 0.0
    %2303 = vmatpush1.msra.mxu0 0.0
    %2304 = vmatprep.subr.mxu0 0.0
    %2305 = vmatpush1.msra.mxu0 0.0
    %2306 = vmatprep.subr.mxu0 0.0
    %2307 = vmatpush1.msra.mxu0 0.0
    %2308 = vmatprep.subr.mxu0 0.0
    %2309 = vmatpush1.msra.mxu0 0.0
    %2310 = vmatprep.subr.mxu0 0.0
    %2311 = vmatpush1.msra.mxu0 0.0
    %2312 = vmatprep.subr.mxu0 0.0
    %2313 = vmatpush1.msra.mxu0 0.0
    %2314 = vmatprep.subr.mxu0 0.0
    %2315 = vmatpush1.msra.mxu0 0.0
    %2316 = vmatprep.subr.mxu0 0.0
    %2317 = vmatpush1.msra.mxu0 0.0
    %2318 = vmatprep.subr.mxu0 0.0
    %2319 = vmatpush1.msra.mxu0 0.0
    %2320 = vmatprep.subr.mxu0 0.0
    %2321 = vmatpush1.msra.mxu0 0.0
    %2322 = vmatprep.subr.mxu0 0.0
    %2323 = vmatpush1.msra.mxu0 0.0
    %2324 = vmatprep.subr.mxu0 0.0
    %2325 = vmatpush1.msra.mxu0 0.0
    %2326 = vmatprep.subr.mxu0 0.0
    %2327 = vmatpush1.msra.mxu0 0.0
    %2328 = vmatprep.subr.mxu0 0.0
    %2329 = vmatpush1.msra.mxu0 0.0
    %2330 = vmatprep.mubr.f32.mxu0 0.0
    %2331 = vmatmul.mubr.f32.gmra.mrb[0].mxu0 %v2264
    %v2332 = vpop.f32.mrb[0].mxu0
    %v2333 = vadd.f32 %v2261, %v2332
    %v2334 = vpop.f32.mrb[0].mxu0
    %2335 = vdwg.mxu0
    %vm2336 = vcmask 25600
    %2337 = vst.msk [vmem:[#allocation6] sm:$0x3] %vm2336, %v2333
    %v2338 = vsel %vm185, %v2013, 0.0
    %v2339 = vsel %vm185, %v2014, 0.0
    %v2340 = vadd.f32 %v2338, %v2339
    %v2341 = vsel %vm185, %v2015, 0.0
    %v2342 = vadd.f32 %v2340, %v2341
    %v2343 = vsel %vm185, %v2016, 0.0
    %v2344 = vadd.f32 %v2342, %v2343
    %2345 = vadd.xlane.f32.xlu0 %v2344
    %v2346 = vpop.xlane.xlu0 %2345
    %v2347 = vrot.slane %v2346, 4
    %v2348 = vadd.f32 %v2346, %v2347
    %v2349 = vrot.slane %v2348, 2
    %v2350 = vadd.f32 %v2348, %v2349
    %v2351 = vrot.slane %v2350, 1
    %v2352 = vadd.f32 %v2350, %v2351
    %s2353 = vtos %v2352
    %s2354 = smul.f32 %s2353, 0.25
    %v2355 = vrcp.pop 1024.0
    %s2356 = vtos %v2355
    %s2357 = smul.f32 %s2354, %s2356
    %s2358 = scalar_lea.smem [#allocation9], 0
    %2359 = sst [smem:[%s2358]] %s2357
    // Predicated region
    $region46: #{tpu_custom_call.1} parent=1 // pred_check
      _
    $region47: #{tpu_custom_call.1} parent=1 // pred_check_branch
      %2361 = sbr.rel (0) target = $region49
    $region48: #{tpu_custom_call.1} parent=1 // pred_region
      %s2363 = ssub.s32 32, 32
      %2364 = vsyncadd [#allocation4], %s2363
      %s2366 = sshll.u32 [#allocation6], 4
      %s2367 = int_to_ptr.vmem [resolvable:$true] %s2366
      %2369 = dma.vmem_to_hbm [thread:$0]  %s2367, 32, %s10, [#allocation4]
    $region49: #{tpu_custom_call.1} parent=1 // pred_fallthru
      _
    // Predicated region
    $region50: #{tpu_custom_call.1} parent=1 // pred_check
      _
    $region51: #{tpu_custom_call.1} parent=1 // pred_check_branch
      %2371 = sbr.rel (0) target = $region53
    $region52: #{tpu_custom_call.1} parent=1 // pred_region
      %s2373 = ssub.s32 32, 32
      %2374 = vsyncadd [#allocation8], %s2373
      %s2376 = sshll.u32 [#allocation7], 4
      %s2377 = int_to_ptr.vmem [resolvable:$true] %s2376
      %2379 = dma.vmem_to_hbm [thread:$0]  %s2377, 32, %s11, [#allocation8]
    $region53: #{tpu_custom_call.1} parent=1 // pred_fallthru
      _
    // Predicated region
    $region54: #{tpu_custom_call.1} parent=1 // pred_check
      _
    $region55: #{tpu_custom_call.1} parent=1 // pred_check_branch
      %2381 = sbr.rel (0) target = $region57
    $region56: #{tpu_custom_call.1} parent=1 // pred_region
      %s2383 = ssub.s32 16, 16
      %2384 = vsyncadd [#allocation5], %s2383
      %2387 = dma.smem_to_hbm [#allocation9], 16, %s12, [#allocation5]
    $region57: #{tpu_custom_call.1} parent=1 // pred_fallthru
      _
    // Predicated region
    $region58: #{tpu_custom_call.1} parent=1 // pred_check
      _
    $region59: #{tpu_custom_call.1} parent=1 // pred_check_branch
      %2389 = sbr.rel (0) target = $region61
    $region60: #{tpu_custom_call.1} parent=1 // pred_region
      %2390 = dma.done [#allocation4], 32
    $region61: #{tpu_custom_call.1} parent=1 // pred_fallthru
      _
    // Predicated region
    $region62: #{tpu_custom_call.1} parent=1 // pred_check
      _
    $region63: #{tpu_custom_call.1} parent=1 // pred_check_branch
      %2392 = sbr.rel (0) target = $region65
    $region64: #{tpu_custom_call.1} parent=1 // pred_region
      %2393 = dma.done [#allocation8], 32
    $region65: #{tpu_custom_call.1} parent=1 // pred_fallthru
      _
    // Predicated region
    $region66: #{tpu_custom_call.1} parent=1 // pred_check
      _
    $region67: #{tpu_custom_call.1} parent=1 // pred_check_branch
      %2395 = sbr.rel (0) target = $region69
    $region68: #{tpu_custom_call.1} parent=1 // pred_region
      %2396 = dma.done [#allocation5], 16
    $region69: #{tpu_custom_call.1} parent=1 // pred_fallthru
      _
    %2397 = sfence
    %2398 = vsyncpa [#allocation3], 1
    %2399 = vsyncpa [#allocation4], 1
    %2400 = vsyncpa [#allocation8], 1
    %2401 = vsyncpa [#allocation5], 1

</llo_original>
